<compile_context>
chip_gen: v6e
topology: v6e:2x2x1
jax: 0.10.0
libtpu: 0.0.40
codegen_flags: <defaults>
</compile_context>

<pallas_src>
import jax
import jax.numpy as jnp
from jax.experimental import pallas as pl
from jax.experimental.pallas import tpu as pltpu

# ----------------------------- dimensions ------------------------------
B        = 128  # batch (actions per env.forward call) -- fills the MXU M dim
Z_CONT   = 6    # continuous latent dim (action)
Z_DISC   = 2    # discrete latent dim (disc dict values)
Z_DIM    = Z_CONT + Z_DISC
G_HID    = 32   # generator hidden
GEN_DIM  = 16   # generator output / state dim
D_HID    = 32   # discriminator hidden
DEC_DIM  = 24   # decoded-feature dim (stands in for discrete+cont+binary concat)
C_HID    = 32   # classifier hidden
N_CLASS  = 4    # number of classes

DD_DIM   = D_HID + DEC_DIM    # fused (discriminator layer-1 | decoder head) = 56
D_BLK    = C_HID + 1          # fused (classifier layer-1 | discriminator layer-2) = 33

CL_REWARD_COEFF = 0.5
D_REWARD_COEFF  = 1.0

# -------------- packed parameter buffer layout ((P_ROWS, 128) f32) -------
# Each parameter occupies rows [OFF, OFF+rows) and columns [0, cols); row
# offsets are multiples of 8 so every slab is sublane-tile aligned.
LANES     = 128
OFF_WG1A  = 0      # (Z_CONT+1, G_HID)  -- [wg1_cont ; bg1 + disc_vals @ wg1_disc]
OFF_WG2   = 8      # (G_HID, GEN_DIM)
OFF_BG2   = 40     # (1, GEN_DIM)
OFF_WDD   = 48     # (GEN_DIM, DD_DIM)  -- [wd1 | wdec] fused
OFF_BDD   = 64     # (1, DD_DIM)
OFF_WBLK  = 72     # (DD_DIM, D_BLK)    -- block-diag [0, wd2 ; wc1, 0]
OFF_BBLK  = 128    # (1, D_BLK)         -- [bc1 | bd2]
OFF_WC2   = 136    # (C_HID, N_CLASS)
OFF_BC2   = 168    # (1, N_CLASS)
P_ROWS    = 176    # 176 x 128 x 4 B = 88 KiB -> a single, grid-resident DMA

# -------------- packed dynamic input / output layouts --------------------
X_COLS     = Z_CONT + 1         # [action | 1.0]  (ones column folds the g1 bias)
OUT_LANES  = 128                # one lane-dense (B, 128) output block per step
COL_CE     = GEN_DIM            # column 16: cross-entropy per row
COL_REWARD = GEN_DIM + 1        # column 17: reward per row
OUT_USED   = GEN_DIM + 2


# ------------------------------- kernel --------------------------------
def env_kernel(x_ref, tgt_ref, p_ref, out_ref):
    x   = x_ref[...]                                   # (B, Z_CONT+1) f32
    tgt = tgt_ref[...]                                 # (B, 1) int32

    def slab(row, rows, cols):
        return p_ref[pl.ds(row, rows), pl.ds(0, cols)]

    # ---- generator (z_disc folded into the aug-bias row, bias via ones col)
    h_g = jnp.tanh(jnp.dot(x, slab(OFF_WG1A, Z_CONT + 1, G_HID),
                           preferred_element_type=jnp.float32))
    gen = jnp.tanh(jnp.dot(h_g, slab(OFF_WG2, G_HID, GEN_DIM),
                           preferred_element_type=jnp.float32)
                   + slab(OFF_BG2, 1, GEN_DIM))                       # (B, GEN_DIM)

    # ---- fused: discriminator layer-1  +  decoder head (both consume gen)
    # TODO(synk): per-feature discrete/continuous/binary decoding heads of the
    # original decoder (and the utils.* glue) are collapsed into one dense
    # "decoded" projection -- the decoder sub-networks are not in the spec.
    hd_dec = jnp.tanh(jnp.dot(gen, slab(OFF_WDD, GEN_DIM, DD_DIM),
                              preferred_element_type=jnp.float32)
                      + slab(OFF_BDD, 1, DD_DIM))                     # (B, 56)

    # ---- fused: classifier layer-1 + discriminator layer-2 (block-diagonal)
    z2 = (jnp.dot(hd_dec, slab(OFF_WBLK, DD_DIM, D_BLK),
                  preferred_element_type=jnp.float32)
          + slab(OFF_BBLK, 1, D_BLK))                                 # (B, 33)
    h_c     = jnp.tanh(z2[:, :C_HID])                                 # (B, 32)
    d_logit = z2[:, C_HID:]                                           # (B, 1) no act.

    # ---- classifier logits ----
    logits = (jnp.dot(h_c, slab(OFF_WC2, C_HID, N_CLASS),
                      preferred_element_type=jnp.float32)
              + slab(OFF_BC2, 1, N_CLASS))                            # (B, N_CLASS)

    # ---- cross entropy: logsumexp(logits) - logit[target] (iota gather) ----
    m   = jnp.max(logits, axis=1, keepdims=True)
    lse = m + jnp.log(jnp.sum(jnp.exp(logits - m), axis=1, keepdims=True))
    cls = jax.lax.broadcasted_iota(jnp.int32, (B, N_CLASS), 1)
    tgt_logit = jnp.sum(jnp.where(cls == tgt, logits, 0.0),
                        axis=1, keepdims=True)
    ce = lse - tgt_logit                                              # (B, 1)

    # ---- reward_d = BCE(sigmoid(d_logit), ones) = mean(softplus(-d_logit)) --
    sp = jnp.maximum(-d_logit, 0.0) + jnp.log(1.0 + jnp.exp(-jnp.abs(d_logit)))
    reward_d = jnp.mean(sp)                                           # per-call scalar

    reward = CL_REWARD_COEFF * ce + D_REWARD_COEFF * reward_d         # (B, 1)

    # ---- single unmasked lane-dense store of the packed output block ----
    pad = jnp.zeros((B, OUT_LANES - OUT_USED), jnp.float32)
    out_ref[...] = jnp.concatenate([gen, ce, reward, pad], axis=1)


# ------------------------------ wrappers ---------------------------------
def make_params(key):
    def dense(key, fan_in, fan_out):
        kw, _ = jax.random.split(key)
        w = jax.random.normal(kw, (fan_in, fan_out), jnp.float32) * (1.0 / jnp.sqrt(fan_in))
        b = jnp.zeros((1, fan_out), jnp.float32)
        return w, b

    keys = jax.random.split(key, 6)
    wg1, bg1   = dense(keys[0], Z_DIM, G_HID)
    wg2, bg2   = dense(keys[1], G_HID, GEN_DIM)
    wd1, bd1   = dense(keys[2], GEN_DIM, D_HID)
    wd2, bd2   = dense(keys[3], D_HID, 1)
    wdec, bdec = dense(keys[4], GEN_DIM, DEC_DIM)
    kc1, kc2 = jax.random.split(keys[5])
    wc1, bc1   = dense(kc1, DEC_DIM, C_HID)
    wc2, bc2   = dense(kc2, C_HID, N_CLASS)
    return (wg1, bg1, wg2, bg2, wd1, bd1, wd2, bd2,
            wdec, bdec, wc1, bc1, wc2, bc2)


def pack_params(params, disc_vals):
    """Pack all weights/biases into one (P_ROWS, 128) f32 buffer.

    Called once per episode (the disc dict values are constant per episode):
      * constant z_disc contribution is folded into the generator layer-1 bias,
        which is appended as an extra input row (matched by a ones column),
      * discriminator layer-1 and the decoder head are horizontally fused,
      * classifier layer-1 and discriminator layer-2 are fused block-diagonally.
    """
    (wg1, bg1, wg2, bg2, wd1, bd1, wd2, bd2,
     wdec, bdec, wc1, bc1, wc2, bc2) = params

    disc_vals = disc_vals.astype(jnp.float32)
    bg1_eff = bg1 + disc_vals[None, :] @ wg1[Z_CONT:]
    wg1_aug = jnp.concatenate([wg1[:Z_CONT], bg1_eff], axis=0)     # (Z_CONT+1, G_HID)

    w_dd = jnp.concatenate([wd1, wdec], axis=1)                    # (GEN_DIM, DD_DIM)
    b_dd = jnp.concatenate([bd1, bdec], axis=1)                    # (1, DD_DIM)

    # block-diag: rows 0..D_HID-1 (h_d) -> col C_HID (disc layer-2)
    #             rows D_HID..      (decoded) -> cols 0..C_HID-1 (classifier layer-1)
    w_blk = jnp.zeros((DD_DIM, D_BLK), jnp.float32)
    w_blk = w_blk.at[:D_HID, C_HID:].set(wd2)
    w_blk = w_blk.at[D_HID:, :C_HID].set(wc1)
    b_blk = jnp.concatenate([bc1, bd2], axis=1)                    # (1, D_BLK)

    buf = jnp.zeros((P_ROWS, LANES), jnp.float32)

    def put(b, row, a):
        r, c = a.shape
        return b.at[row:row + r, :c].set(a.astype(jnp.float32))

    buf = put(buf, OFF_WG1A, wg1_aug)
    buf = put(buf, OFF_WG2,  wg2)
    buf = put(buf, OFF_BG2,  bg2)
    buf = put(buf, OFF_WDD,  w_dd)
    buf = put(buf, OFF_BDD,  b_dd)
    buf = put(buf, OFF_WBLK, w_blk)
    buf = put(buf, OFF_BBLK, b_blk)
    buf = put(buf, OFF_WC2,  wc2)
    buf = put(buf, OFF_BC2,  bc2)
    return buf


@jax.jit
def env_rollout(actions, episode_targets, packed_params):
    """T env.forward calls in ONE pallas_call.

    actions:         (T, B, Z_CONT)  float
    episode_targets: (T, B)          int
    Mirrors Env.forward(action, disc, episode_target) per grid step; `disc`
    is baked into packed_params (constant per episode).
    """
    T = actions.shape[0]
    ones = jnp.ones((T, B, 1), jnp.float32)
    x = jnp.concatenate([actions.astype(jnp.float32), ones],
                        axis=-1).reshape(T * B, X_COLS)
    tgt = jnp.clip(episode_targets.astype(jnp.int32), 0,
                   N_CLASS - 1).reshape(T * B, 1)

    out = pl.pallas_call(
        env_kernel,
        out_shape=jax.ShapeDtypeStruct((T * B, OUT_LANES), jnp.float32),
        grid=(T,),
        in_specs=[
            pl.BlockSpec((B, X_COLS), lambda t: (t, 0)),        # per-step dynamic
            pl.BlockSpec((B, 1),      lambda t: (t, 0)),        # per-step targets
            pl.BlockSpec((P_ROWS, LANES), lambda t: (0, 0)),    # params: resident
        ],
        out_specs=pl.BlockSpec((B, OUT_LANES), lambda t: (t, 0)),
        compiler_params=pltpu.CompilerParams(
            dimension_semantics=("parallel",)),
    )(x, tgt, packed_params)

    out = out.reshape(T, B, OUT_LANES)
    next_state = out[:, :, :GEN_DIM]   # torch .squeeze(1): dim is GEN_DIM != 1 -> no-op
    ce         = out[:, :, COL_CE]
    reward     = out[:, :, COL_REWARD]
    done = True
    return next_state, reward, done, ce


def _env_call_reference(action, disc_vals, episode_target, params):
    """Pure-JAX reference of ONE forward call (un-fused, un-folded)."""
    (wg1, bg1, wg2, bg2, wd1, bd1, wd2, bd2,
     wdec, bdec, wc1, bc1, wc2, bc2) = params
    z_cont = action.astype(jnp.float32)
    z_disc = jnp.broadcast_to(disc_vals[None, :].astype(jnp.float32),
                              (z_cont.shape[0], Z_DISC))
    z = jnp.concatenate([z_cont, z_disc], axis=1)
    h_g = jnp.tanh(z @ wg1 + bg1)
    gen = jnp.tanh(h_g @ wg2 + bg2)
    h_d = jnp.tanh(gen @ wd1 + bd1)
    d_logit = h_d @ wd2 + bd2
    decoded = jnp.tanh(gen @ wdec + bdec)
    h_c = jnp.tanh(decoded @ wc1 + bc1)
    logits = h_c @ wc2 + bc2
    tgt = jnp.clip(episode_target.astype(jnp.int32), 0, N_CLASS - 1)
    ce = (jax.nn.logsumexp(logits, axis=1)
          - jnp.take_along_axis(logits, tgt[:, None], axis=1)[:, 0])
    reward_d = jnp.mean(jax.nn.softplus(-d_logit))
    reward = CL_REWARD_COEFF * ce + D_REWARD_COEFF * reward_d
    return gen, reward, ce


env_reference = jax.vmap(_env_call_reference, in_axes=(0, None, 0, None))


if __name__ == "__main__":
    key = jax.random.PRNGKey(0)
    k_act, k_tgt, k_par = jax.random.split(key, 3)

    T = 4                                                         # timesteps per rollout
    actions = jax.random.normal(k_act, (T, B, Z_CONT), jnp.float32)
    episode_targets = jax.random.randint(k_tgt, (T, B), 0, N_CLASS, jnp.int32)
    disc_vals = jnp.array([1.0, 0.0], jnp.float32)                # disc dict values

    params = make_params(k_par)
    packed = pack_params(params, disc_vals)                       # once per episode

    next_state, reward, done, ce = env_rollout(actions, episode_targets, packed)
    jax.block_until_ready((next_state, reward, ce))

    # correctness check against the pure-JAX reference
    ref_state, ref_reward, ref_ce = env_reference(actions, disc_vals,
                                                  episode_targets, params)

    assert next_state.shape == (T, B, GEN_DIM)
    assert reward.shape == (T, B)
    assert ce.shape == (T, B)
    assert bool(jnp.all(jnp.isfinite(next_state)))
    assert bool(jnp.all(jnp.isfinite(reward)))
    assert bool(jnp.allclose(next_state, ref_state, atol=2e-3, rtol=2e-3))
    assert bool(jnp.allclose(ce, ref_ce, atol=2e-3, rtol=2e-3))
    assert bool(jnp.allclose(reward, ref_reward, atol=2e-3, rtol=2e-3))
    print("KERNEL_OK")
</pallas_src>

<mosaic_0001>
module attributes {stable_mosaic.version = 11 : i64} {
  func.func @env_kernel(%arg0: i32, %arg1: memref<128x7xf32, #tpu.memory_space<vmem>>, %arg2: memref<128x1xi32, #tpu.memory_space<vmem>>, %arg3: memref<176x128xf32, #tpu.memory_space<vmem>>, %arg4: memref<128x128xf32, #tpu.memory_space<vmem>>) attributes {dimension_semantics = [#tpu.dimension_semantics<parallel>], iteration_bounds = array<i64: 4>, scalar_prefetch = 0 : i64, scratch_operands = 0 : i64, tpu.core_type = #tpu.core_type<tc>, window_params = [{transform_indices = @transform_0, window_bounds = array<i64: 128, 7>}, {transform_indices = @transform_1, window_bounds = array<i64: 128, 1>}, {pipeline_mode = #tpu.pipeline_mode<synchronous>, transform_indices = @transform_2, window_bounds = array<i64: 176, 128>}, {transform_indices = @transform_3, window_bounds = array<i64: 128, 128>}]} {
    %c0 = arith.constant 0 : index
    %c0_0 = arith.constant 0 : index
    %0 = vector.load %arg1[%c0, %c0_0] : memref<128x7xf32, #tpu.memory_space<vmem>>, vector<128x7xf32>
    %c0_1 = arith.constant 0 : index
    %c0_2 = arith.constant 0 : index
    %1 = vector.load %arg2[%c0_1, %c0_2] : memref<128x1xi32, #tpu.memory_space<vmem>>, vector<128x1xi32>
    %c0_3 = arith.constant 0 : index
    %c0_4 = arith.constant 0 : index
    %2 = vector.load %arg3[%c0_3, %c0_4] : memref<176x128xf32, #tpu.memory_space<vmem>>, vector<7x32xf32>
    %cst = arith.constant dense<0.000000e+00> : vector<128x32xf32>
    %3 = tpu.matmul %0, %2, %cst {dimension_numbers = #tpu.dot_dimension_numbers<[1], [0], [0], [1], [0, 0, 1, 1], [], []>} : vector<128x7xf32>, vector<7x32xf32>, vector<128x32xf32> -> vector<128x32xf32>
    %4 = math.tanh %3 : vector<128x32xf32>
    %c8 = arith.constant 8 : index
    %c0_5 = arith.constant 0 : index
    %5 = vector.load %arg3[%c8, %c0_5] : memref<176x128xf32, #tpu.memory_space<vmem>>, vector<32x16xf32>
    %cst_6 = arith.constant dense<0.000000e+00> : vector<128x16xf32>
    %6 = tpu.matmul %4, %5, %cst_6 {dimension_numbers = #tpu.dot_dimension_numbers<[1], [0], [0], [1], [0, 0, 1, 1], [], []>} : vector<128x32xf32>, vector<32x16xf32>, vector<128x16xf32> -> vector<128x16xf32>
    %c40 = arith.constant 40 : index
    %c0_7 = arith.constant 0 : index
    %7 = vector.load %arg3[%c40, %c0_7] : memref<176x128xf32, #tpu.memory_space<vmem>>, vector<1x16xf32>
    %8 = vector.broadcast %7 : vector<1x16xf32> to vector<128x16xf32>
    %9 = arith.addf %6, %8 : vector<128x16xf32>
    %10 = math.tanh %9 : vector<128x16xf32>
    %c48 = arith.constant 48 : index
    %c0_8 = arith.constant 0 : index
    %11 = vector.load %arg3[%c48, %c0_8] : memref<176x128xf32, #tpu.memory_space<vmem>>, vector<16x56xf32>
    %cst_9 = arith.constant dense<0.000000e+00> : vector<128x56xf32>
    %12 = tpu.matmul %10, %11, %cst_9 {dimension_numbers = #tpu.dot_dimension_numbers<[1], [0], [0], [1], [0, 0, 1, 1], [], []>} : vector<128x16xf32>, vector<16x56xf32>, vector<128x56xf32> -> vector<128x56xf32>
    %c64 = arith.constant 64 : index
    %c0_10 = arith.constant 0 : index
    %13 = vector.load %arg3[%c64, %c0_10] : memref<176x128xf32, #tpu.memory_space<vmem>>, vector<1x56xf32>
    %14 = vector.broadcast %13 : vector<1x56xf32> to vector<128x56xf32>
    %15 = arith.addf %12, %14 : vector<128x56xf32>
    %16 = math.tanh %15 : vector<128x56xf32>
    %c72 = arith.constant 72 : index
    %c0_11 = arith.constant 0 : index
    %17 = vector.load %arg3[%c72, %c0_11] : memref<176x128xf32, #tpu.memory_space<vmem>>, vector<56x33xf32>
    %cst_12 = arith.constant dense<0.000000e+00> : vector<128x33xf32>
    %18 = tpu.matmul %16, %17, %cst_12 {dimension_numbers = #tpu.dot_dimension_numbers<[1], [0], [0], [1], [0, 0, 1, 1], [], []>} : vector<128x56xf32>, vector<56x33xf32>, vector<128x33xf32> -> vector<128x33xf32>
    %c128 = arith.constant 128 : index
    %c0_13 = arith.constant 0 : index
    %19 = vector.load %arg3[%c128, %c0_13] : memref<176x128xf32, #tpu.memory_space<vmem>>, vector<1x33xf32>
    %20 = vector.broadcast %19 : vector<1x33xf32> to vector<128x33xf32>
    %21 = arith.addf %18, %20 : vector<128x33xf32>
    %22 = vector.extract_strided_slice %21 {offsets = [0, 0], sizes = [128, 32], strides = [1, 1]} : vector<128x33xf32> to vector<128x32xf32>
    %23 = math.tanh %22 : vector<128x32xf32>
    %24 = vector.extract_strided_slice %21 {offsets = [0, 32], sizes = [128, 1], strides = [1, 1]} : vector<128x33xf32> to vector<128x1xf32>
    %c136 = arith.constant 136 : index
    %c0_14 = arith.constant 0 : index
    %25 = vector.load %arg3[%c136, %c0_14] : memref<176x128xf32, #tpu.memory_space<vmem>>, vector<32x4xf32>
    %cst_15 = arith.constant dense<0.000000e+00> : vector<128x4xf32>
    %26 = tpu.matmul %23, %25, %cst_15 {dimension_numbers = #tpu.dot_dimension_numbers<[1], [0], [0], [1], [0, 0, 1, 1], [], []>} : vector<128x32xf32>, vector<32x4xf32>, vector<128x4xf32> -> vector<128x4xf32>
    %c168 = arith.constant 168 : index
    %c0_16 = arith.constant 0 : index
    %27 = vector.load %arg3[%c168, %c0_16] : memref<176x128xf32, #tpu.memory_space<vmem>>, vector<1x4xf32>
    %28 = vector.broadcast %27 : vector<1x4xf32> to vector<128x4xf32>
    %29 = arith.addf %26, %28 : vector<128x4xf32>
    %cst_17 = arith.constant dense<0xFF800000> : vector<128xf32>
    %30 = vector.multi_reduction <maximumf>, %29, %cst_17 [1] : vector<128x4xf32> to vector<128xf32>
    %31 = vector.shape_cast %30 : vector<128xf32> to vector<128x1xf32>
    %32 = vector.broadcast %31 : vector<128x1xf32> to vector<128x4xf32>
    %33 = arith.subf %29, %32 : vector<128x4xf32>
    %34 = math.exp %33 : vector<128x4xf32>
    %cst_18 = arith.constant dense<0.000000e+00> : vector<128xf32>
    %35 = vector.multi_reduction <add>, %34, %cst_18 [1] : vector<128x4xf32> to vector<128xf32>
    %36 = vector.shape_cast %35 : vector<128xf32> to vector<128x1xf32>
    %37 = math.log %36 : vector<128x1xf32>
    %38 = arith.addf %31, %37 : vector<128x1xf32>
    %39 = tpu.iota {dimensions = array<i32: 1>} : vector<128x4xi32>
    %40 = vector.broadcast %1 : vector<128x1xi32> to vector<128x4xi32>
    %41 = arith.cmpi eq, %39, %40 : vector<128x4xi32>
    %cst_19 = arith.constant 0.000000e+00 : f32
    %42 = vector.broadcast %cst_19 : f32 to vector<128x4xf32>
    %43 = arith.select %41, %29, %42 : vector<128x4xi1>, vector<128x4xf32>
    %cst_20 = arith.constant dense<0.000000e+00> : vector<128xf32>
    %44 = vector.multi_reduction <add>, %43, %cst_20 [1] : vector<128x4xf32> to vector<128xf32>
    %45 = vector.shape_cast %44 : vector<128xf32> to vector<128x1xf32>
    %46 = arith.subf %38, %45 : vector<128x1xf32>
    %cst_21 = arith.constant 0.000000e+00 : f32
    %47 = vector.broadcast %cst_21 : f32 to vector<128x1xf32>
    %48 = arith.subf %47, %24 : vector<128x1xf32>
    %cst_22 = arith.constant 0.000000e+00 : f32
    %49 = vector.broadcast %cst_22 : f32 to vector<128x1xf32>
    %50 = arith.maximumf %48, %49 : vector<128x1xf32>
    %51 = math.absf %24 : vector<128x1xf32>
    %cst_23 = arith.constant 0.000000e+00 : f32
    %52 = vector.broadcast %cst_23 : f32 to vector<128x1xf32>
    %53 = arith.subf %52, %51 : vector<128x1xf32>
    %54 = math.exp %53 : vector<128x1xf32>
    %cst_24 = arith.constant 1.000000e+00 : f32
    %55 = vector.broadcast %cst_24 : f32 to vector<128x1xf32>
    %56 = arith.addf %55, %54 : vector<128x1xf32>
    %57 = math.log %56 : vector<128x1xf32>
    %58 = arith.addf %50, %57 : vector<128x1xf32>
    %59 = vector.shape_cast %58 : vector<128x1xf32> to vector<1x128x1xf32>
    %cst_25 = arith.constant dense<0.000000e+00> : vector<1xf32>
    %60 = vector.multi_reduction <add>, %59, %cst_25 [1, 2] : vector<1x128x1xf32> to vector<1xf32>
    %61 = vector.shape_cast %60 : vector<1xf32> to vector<1x1x1xf32>
    %62 = vector.extract %61[0, 0, 0] : f32 from vector<1x1x1xf32>
    %cst_26 = arith.constant 1.280000e+02 : f32
    %63 = arith.divf %62, %cst_26 : f32
    %cst_27 = arith.constant 5.000000e-01 : f32
    %64 = vector.broadcast %cst_27 : f32 to vector<128x1xf32>
    %65 = arith.mulf %64, %46 : vector<128x1xf32>
    %cst_28 = arith.constant 1.000000e+00 : f32
    %66 = arith.mulf %cst_28, %63 : f32
    %67 = vector.broadcast %66 : f32 to vector<128x1xf32>
    %68 = arith.addf %65, %67 : vector<128x1xf32>
    %cst_29 = arith.constant 0.000000e+00 : f32
    %69 = vector.broadcast %cst_29 : f32 to vector<128x110xf32>
    %70 = tpu.concatenate %10, %46, %68, %69 in 1 : vector<128x16xf32>, vector<128x1xf32>, vector<128x1xf32>, vector<128x110xf32> -> vector<128x128xf32>
    %c0_30 = arith.constant 0 : index
    %c0_31 = arith.constant 0 : index
    %71 = vector.load %arg4[%c0_30, %c0_31] : memref<128x128xf32, #tpu.memory_space<vmem>>, vector<128x128xf32>
    tpu.vector_store %arg4[%c0_30, %c0_31], %70 {strides = array<i32>} : memref<128x128xf32, #tpu.memory_space<vmem>>, vector<128x128xf32>,
    return
  }
  func.func @transform_0(%arg0: i32) -> (i32, i32) {
    %c0_i32 = arith.constant 0 : i32
    %c0_i32_0 = arith.constant 0 : i32
    return %arg0, %c0_i32 : i32, i32
  }
  func.func @transform_1(%arg0: i32) -> (i32, i32) {
    %c0_i32 = arith.constant 0 : i32
    %c0_i32_0 = arith.constant 0 : i32
    return %arg0, %c0_i32 : i32, i32
  }
  func.func @transform_2(%arg0: i32) -> (i32, i32) {
    %c0_i32 = arith.constant 0 : i32
    %c0_i32_0 = arith.constant 0 : i32
    %c0_i32_1 = arith.constant 0 : i32
    return %c0_i32, %c0_i32_0 : i32, i32
  }
  func.func @transform_3(%arg0: i32) -> (i32, i32) {
    %c0_i32 = arith.constant 0 : i32
    %c0_i32_0 = arith.constant 0 : i32
    return %arg0, %c0_i32 : i32, i32
  }
}

</mosaic_0001>

<llo_original>
// kernel: env_rollout.1
$region0: #{env_rollout.1}
  #allocation0 [shape = 'u32[]', space=smem, size = 0x4, offset = 0x4, fixed_abs, tag = 'smem constant byte address 0x4 - core index']
  #allocation1 [shape = 'u32[144,128]{1,0:T(1,128)}', space=vmem, size = 0x12000, scoped, tag = 'internal scratch']
  %s0 = inlined_call_operand.vmem [shape: f32[512,7], index: 0, kind: input, shape index: {}]
  %s1 = inlined_call_operand.vmem [shape: s32[512,1], index: 1, kind: input, shape index: {}]
  %s2 = inlined_call_operand.vmem [shape: f32[176,128], index: 2, kind: input, shape index: {}]
  %s3 = inlined_call_operand.vmem [shape: f32[512,128], index: 3, kind: output, shape index: {}]
  %s4 = sld [smem:[#allocation0]]
  $region45: #{env_rollout.1} parent=0
    _
  %s6 = ssub.s32 1, %s4
  %s7 = scalar_select 0, %s6, %s4
  loop: start=0, step=1, limit=6
  $region2: #{env_rollout.1} parent=0 // loop_pre_header
    _
  $region3: #{env_rollout.1} parent=0 // loop_header
    %s9 = sphi 0, %s13
    %p10 = scmp.ge.s32.totalorder %s9, 6
    %s19 = sphi 0, %s21
    %s22 = sphi 0, %s19
    %s23 = sphi 0, %s22
    %s39 = sphi 0, %s23
    %s45 = sphi 0, %s47
    %s48 = sphi 0, %s45
    %s49 = sphi 0, %s48
    %s65 = sphi 0, %s49
    %s69 = sphi 0, %s69
    %s71 = sphi 0, %s69
    %s72 = sphi 0, %s71
    %s86 = sphi 0, %s72
    %s92 = sphi 0, %s94
    %s95 = sphi 0, %s92
    %s96 = sphi 0, %s95
    %s112 = sphi 0, %s96
  $region4: #{env_rollout.1} parent=0 // loop_header_branch
    %12 = sbr.rel (%p10) target = $region8
  $region5: #{env_rollout.1} parent=0 // loop_body
    %s14 = ssub.s32 %s9, 1
    %s15 = ssub.s32 %s9, 2
    %s16 = sadd.s32 %s9, 1
    %s17 = ssub.s32 %s9, %s16
    %p18 = scmp.eq.s32.totalorder %s17, 0
    %s20 = sadd.s32 %s19, 1
    %s21 = scalar_select %p18, %s19, %s20
    %p24 = pneg %p18
    %p25 = scmp.eq.s32.totalorder %s9, 3
    %p26 = por %p24, %p25
    %p27 = scmp.ne.s32.totalorder %s19, %s22
    %p28 = scmp.eq.s32.totalorder %s9, 0
    %p29 = por %p27, %p28
    %p30 = scmp.ne.s32.totalorder %s19, %s22
    %p31 = scmp.eq.s32.totalorder %s14, 3
    %p32 = por %p30, %p31
    %p33 = scmp.ne.s32.totalorder %s22, %s23
    %p34 = scmp.eq.s32.totalorder %s14, 0
    %p35 = por %p33, %p34
    %p36 = scmp.ne.s32.totalorder %s22, %s23
    %p37 = scmp.eq.s32.totalorder %s15, 3
    %p38 = por %p36, %p37
    %p40 = scmp.ne.s32.totalorder %s23, %s39
    %p41 = scmp.eq.s32.totalorder %s15, 0
    %p42 = por %p40, %p41
    %s43 = ssub.s32 %s9, %s16
    %p44 = scmp.eq.s32.totalorder %s43, 0
    %s46 = sadd.s32 %s45, 1
    %s47 = scalar_select %p44, %s45, %s46
    %p50 = pneg %p44
    %p51 = scmp.eq.s32.totalorder %s9, 3
    %p52 = por %p50, %p51
    %p53 = scmp.ne.s32.totalorder %s45, %s48
    %p54 = scmp.eq.s32.totalorder %s9, 0
    %p55 = por %p53, %p54
    %p56 = scmp.ne.s32.totalorder %s45, %s48
    %p57 = scmp.eq.s32.totalorder %s14, 3
    %p58 = por %p56, %p57
    %p59 = scmp.ne.s32.totalorder %s48, %s49
    %p60 = scmp.eq.s32.totalorder %s14, 0
    %p61 = por %p59, %p60
    %p62 = scmp.ne.s32.totalorder %s48, %s49
    %p63 = scmp.eq.s32.totalorder %s15, 3
    %p64 = por %p62, %p63
    %p66 = scmp.ne.s32.totalorder %s49, %s65
    %p67 = scmp.eq.s32.totalorder %s15, 0
    %p68 = por %p66, %p67
    %s70 = sadd.s32 %s69, 1
    %p73 = scmp.eq.s32.totalorder %s9, 3
    %p74 = scmp.ne.s32.totalorder %s69, %s71
    %p75 = scmp.eq.s32.totalorder %s9, 0
    %p76 = por %p74, %p75
    %p77 = scmp.ne.s32.totalorder %s69, %s71
    %p78 = scmp.eq.s32.totalorder %s14, 3
    %p79 = por %p77, %p78
    %p80 = scmp.ne.s32.totalorder %s71, %s72
    %p81 = scmp.eq.s32.totalorder %s14, 0
    %p82 = por %p80, %p81
    %p83 = scmp.ne.s32.totalorder %s71, %s72
    %p84 = scmp.eq.s32.totalorder %s15, 3
    %p85 = por %p83, %p84
    %p87 = scmp.ne.s32.totalorder %s72, %s86
    %p88 = scmp.eq.s32.totalorder %s15, 0
    %p89 = por %p87, %p88
    %s90 = ssub.s32 %s9, %s16
    %p91 = scmp.eq.s32.totalorder %s90, 0
    %s93 = sadd.s32 %s92, 1
    %s94 = scalar_select %p91, %s92, %s93
    %p97 = pneg %p91
    %p98 = scmp.eq.s32.totalorder %s9, 3
    %p99 = por %p97, %p98
    %p100 = scmp.ne.s32.totalorder %s92, %s95
    %p101 = scmp.eq.s32.totalorder %s9, 0
    %p102 = por %p100, %p101
    %p103 = scmp.ne.s32.totalorder %s92, %s95
    %p104 = scmp.eq.s32.totalorder %s14, 3
    %p105 = por %p103, %p104
    %p106 = scmp.ne.s32.totalorder %s95, %s96
    %p107 = scmp.eq.s32.totalorder %s14, 0
    %p108 = por %p106, %p107
    %p109 = scmp.ne.s32.totalorder %s95, %s96
    %p110 = scmp.eq.s32.totalorder %s15, 3
    %p111 = por %p109, %p110
    %p113 = scmp.ne.s32.totalorder %s96, %s112
    %p114 = scmp.eq.s32.totalorder %s15, 0
    %p115 = por %p113, %p114
    %p116 = scmp.le.s32.totalorder 1, %s9
    %p117 = scmp.lt.s32.totalorder %s9, 5
    %p118 = pnand %p116, %p117
    %p119 = pneg %p118
    // Predicated region
    $region9: #{env_rollout.1} parent=5 // pred_check
      _
    $region10: #{env_rollout.1} parent=5 // pred_check_branch
      %121 = sbr.rel (%p118) target = $region12
    $region11: #{env_rollout.1} parent=5 // pred_region
      %s122 = ssub.s32 %s9, 1
      // Predicated region
      $region13: #{env_rollout.1} parent=11 // pred_check
        %p123 = pneg %p82
      $region14: #{env_rollout.1} parent=11 // pred_check_branch
        %125 = sbr.rel (%p123) target = $region16
      $region15: #{env_rollout.1} parent=11 // pred_region
        _
      $region16: #{env_rollout.1} parent=11 // pred_fallthru
        _
    $region12: #{env_rollout.1} parent=5 // pred_fallthru
      _
    %p126 = scmp.lt.s32.totalorder %s9, 4
    // Predicated region
    $region17: #{env_rollout.1} parent=5 // pred_check
      %p127 = pneg %p126
    $region18: #{env_rollout.1} parent=5 // pred_check_branch
      %129 = sbr.rel (%p127) target = $region20
    $region19: #{env_rollout.1} parent=5 // pred_region
      // Predicated region
      $region21: #{env_rollout.1} parent=19 // pred_check
        %p130 = pneg %p29
      $region22: #{env_rollout.1} parent=19 // pred_check_branch
        %132 = sbr.rel (%p130) target = $region24
      $region23: #{env_rollout.1} parent=19 // pred_region
        %s133 = smul.u32 16, %s9
        %p134 = scmp.lt.s32.totalorder %s133, 63
        %s135 = scalar_select %p134, %s133, 63
        %s136 = smul.addr %s135, 8
        %s137 = scalar_lea.vmem %s0, %s136
        %s138 = smul.u32 16, %s9
      $region24: #{env_rollout.1} parent=19 // pred_fallthru
        _
      // Predicated region
      $region25: #{env_rollout.1} parent=19 // pred_check
        %p139 = pneg %p55
      $region26: #{env_rollout.1} parent=19 // pred_check_branch
        %141 = sbr.rel (%p139) target = $region28
      $region27: #{env_rollout.1} parent=19 // pred_region
        %s142 = smul.u32 16, %s9
        %p143 = scmp.lt.s32.totalorder %s142, 63
        %s144 = scalar_select %p143, %s142, 63
        %s145 = smul.addr %s144, 8
        %s146 = scalar_lea.vmem %s1, %s145
        %s147 = smul.u32 16, %s9
      $region28: #{env_rollout.1} parent=19 // pred_fallthru
        _
    $region20: #{env_rollout.1} parent=5 // pred_fallthru
      _
    %p148 = scmp.le.s32.totalorder 1, %s9
    %p149 = scmp.lt.s32.totalorder %s9, 5
    %p150 = pnand %p148, %p149
    %p151 = pneg %p150
    // Predicated region
    $region29: #{env_rollout.1} parent=5 // pred_check
      _
    $region30: #{env_rollout.1} parent=5 // pred_check_branch
      %153 = sbr.rel (%p150) target = $region32
    $region31: #{env_rollout.1} parent=5 // pred_region
      %s154 = ssub.s32 %s9, 1
      %s155 = smul.u32 16, %s14
      %p156 = scmp.lt.s32.totalorder %s155, 63
      %s157 = scalar_select %p156, %s155, 63
      %s158 = smul.addr %s157, 8
      %s159 = scalar_lea.vmem %s0, %s158
      %p160 = pneg %p35
      %p161 = pneg %p32
      %s162 = smul.u32 16, %s14
      %p163 = scmp.lt.s32.totalorder %s162, 63
      %s164 = scalar_select %p163, %s162, 63
      %s165 = smul.addr %s164, 8
      %s166 = scalar_lea.vmem %s1, %s165
      %p167 = pneg %p61
      %p168 = pneg %p58
      %p169 = pneg %p82
      %p170 = pneg %p79
      %p171 = pneg %p108
      %p172 = pneg %p105
      %s173 = smul.u32 16, %s14
      %p174 = scmp.lt.s32.totalorder %s173, 63
      %s175 = scalar_select %p174, %s173, 63
      %s176 = smul.addr %s175, 8
      %s177 = scalar_lea.vmem %s3, %s176
      %s178 = smul.u32 16, %s14
      %p179 = scmp.lt.s32.totalorder %s178, 63
      %s180 = scalar_select %p179, %s178, 63
      %s181 = smul.addr %s180, 8
      %s182 = scalar_lea.vmem %s0, %s181
      %s183 = smul.u32 16, %s14
      %s184 = smul.u32 16, %s14
      %p185 = scmp.lt.s32.totalorder %s184, 63
      %s186 = scalar_select %p185, %s184, 63
      %s187 = smul.addr %s186, 8
      %s188 = scalar_lea.vmem %s1, %s187
      %s189 = smul.u32 16, %s14
      %s190 = smul.u32 16, %s14
      %p191 = scmp.lt.s32.totalorder %s190, 63
      %s192 = scalar_select %p191, %s190, 63
      %s193 = smul.addr %s192, 8
      %s194 = scalar_lea.vmem %s3, %s193
      %s195 = smul.u32 16, %s14
      %v196 = vld [vmem:[%s182] sm:$0xff]
      %v197 = vld [vmem:[%s182 + $0x8] sm:$0xff]
      %v198 = vld [vmem:[%s182 + $0x10] sm:$0xff]
      %v199 = vld [vmem:[%s182 + $0x18] sm:$0xff]
      %v200 = vld [vmem:[%s182 + $0x20] sm:$0xff]
      %v201 = vld [vmem:[%s182 + $0x28] sm:$0xff]
      %v202 = vld [vmem:[%s182 + $0x30] sm:$0xff]
      %v203 = vld [vmem:[%s182 + $0x38] sm:$0xff]
      %v204 = vld [vmem:[%s182 + $0x40] sm:$0xff]
      %v205 = vld [vmem:[%s182 + $0x48] sm:$0xff]
      %v206 = vld [vmem:[%s182 + $0x50] sm:$0xff]
      %v207 = vld [vmem:[%s182 + $0x58] sm:$0xff]
      %v208 = vld [vmem:[%s182 + $0x60] sm:$0xff]
      %v209 = vld [vmem:[%s182 + $0x68] sm:$0xff]
      %v210 = vld [vmem:[%s182 + $0x70] sm:$0xff]
      %v211 = vld [vmem:[%s182 + $0x78] sm:$0xff]
      %v212 = vld [vmem:[%s188] sm:$0xff]
      %v213 = vld [vmem:[%s188 + $0x8] sm:$0xff]
      %v214 = vld [vmem:[%s188 + $0x10] sm:$0xff]
      %v215 = vld [vmem:[%s188 + $0x18] sm:$0xff]
      %v216 = vld [vmem:[%s188 + $0x20] sm:$0xff]
      %v217 = vld [vmem:[%s188 + $0x28] sm:$0xff]
      %v218 = vld [vmem:[%s188 + $0x30] sm:$0xff]
      %v219 = vld [vmem:[%s188 + $0x38] sm:$0xff]
      %v220 = vld [vmem:[%s188 + $0x40] sm:$0xff]
      %v221 = vld [vmem:[%s188 + $0x48] sm:$0xff]
      %v222 = vld [vmem:[%s188 + $0x50] sm:$0xff]
      %v223 = vld [vmem:[%s188 + $0x58] sm:$0xff]
      %v224 = vld [vmem:[%s188 + $0x60] sm:$0xff]
      %v225 = vld [vmem:[%s188 + $0x68] sm:$0xff]
      %v226 = vld [vmem:[%s188 + $0x70] sm:$0xff]
      %v227 = vld [vmem:[%s188 + $0x78] sm:$0xff]
      %v228 = vld [vmem:[%s2] sm:$0x7f]
      %vm229 = vcmask 56320
      %v231 = vsel %vm229, %v196, 0
      %v234 = vsel %vm229, %v197, 0
      %v237 = vsel %vm229, %v198, 0
      %v240 = vsel %vm229, %v199, 0
      %v243 = vsel %vm229, %v200, 0
      %v246 = vsel %vm229, %v201, 0
      %v249 = vsel %vm229, %v202, 0
      %v252 = vsel %vm229, %v203, 0
      %v255 = vsel %vm229, %v204, 0
      %v258 = vsel %vm229, %v205, 0
      %v261 = vsel %vm229, %v206, 0
      %v264 = vsel %vm229, %v207, 0
      %v267 = vsel %vm229, %v208, 0
      %v270 = vsel %vm229, %v209, 0
      %v273 = vsel %vm229, %v210, 0
      %v276 = vsel %vm229, %v211, 0
      %vm278 = vcmask 1046528
      %v280 = vsel %vm278, %v228, 0
      %282 = vmatprep.subr.mxu0 0.0
      %283 = vmatpush1.msra.mxu0 0.0
      %284 = vmatprep.subr.mxu0 0.0
      %285 = vmatpush1.msra.mxu0 0.0
      %286 = vmatprep.subr.mxu0 0.0
      %287 = vmatpush1.msra.mxu0 0.0
      %288 = vmatprep.subr.mxu0 0.0
      %289 = vmatpush1.msra.mxu0 0.0
      %290 = vmatprep.subr.mxu0 0.0
      %291 = vmatpush1.msra.mxu0 0.0
      %292 = vmatprep.subr.mxu0 0.0
      %293 = vmatpush1.msra.mxu0 0.0
      %294 = vmatprep.subr.mxu0 0.0
      %295 = vmatpush1.msra.mxu0 0.0
      %296 = vmatprep.subr.mxu0 0.0
      %297 = vmatpush1.msra.mxu0 0.0
      %298 = vmatprep.subr.mxu0 0.0
      %299 = vmatpush1.msra.mxu0 0.0
      %300 = vmatprep.subr.mxu0 0.0
      %301 = vmatpush1.msra.mxu0 0.0
      %302 = vmatprep.subr.mxu0 0.0
      %303 = vmatpush1.msra.mxu0 0.0
      %304 = vmatprep.subr.mxu0 0.0
      %305 = vmatpush1.msra.mxu0 0.0
      %306 = vmatprep.subr.mxu0 0.0
      %307 = vmatpush1.msra.mxu0 0.0
      %308 = vmatprep.subr.mxu0 0.0
      %309 = vmatpush1.msra.mxu0 0.0
      %310 = vmatprep.subr.mxu0 0.0
      %311 = vmatpush1.msra.mxu0 0.0
      %312 = vmatprep.subr.mxu0 0.0
      %313 = vmatpush1.msra.mxu0 %v280
      %314 = vmatprep.subr.mxu0 0.0
      %315 = vmatpush2.msra.mxu0 0.0
      %316 = vmatprep.subr.mxu0 0.0
      %317 = vmatpush2.msra.mxu0 0.0
      %318 = vmatprep.subr.mxu0 0.0
      %319 = vmatpush2.msra.mxu0 0.0
      %320 = vmatprep.subr.mxu0 0.0
      %321 = vmatpush2.msra.mxu0 0.0
      %322 = vmatprep.subr.mxu0 0.0
      %323 = vmatpush2.msra.mxu0 0.0
      %324 = vmatprep.subr.mxu0 0.0
      %325 = vmatpush2.msra.mxu0 0.0
      %326 = vmatprep.subr.mxu0 0.0
      %327 = vmatpush2.msra.mxu0 0.0
      %328 = vmatprep.subr.mxu0 0.0
      %329 = vmatpush2.msra.mxu0 0.0
      %330 = vmatprep.subr.mxu0 0.0
      %331 = vmatpush2.msra.mxu0 0.0
      %332 = vmatprep.subr.mxu0 0.0
      %333 = vmatpush2.msra.mxu0 0.0
      %334 = vmatprep.subr.mxu0 0.0
      %335 = vmatpush2.msra.mxu0 0.0
      %336 = vmatprep.subr.mxu0 0.0
      %337 = vmatpush2.msra.mxu0 0.0
      %338 = vmatprep.subr.mxu0 0.0
      %339 = vmatpush2.msra.mxu0 0.0
      %340 = vmatprep.subr.mxu0 0.0
      %341 = vmatpush2.msra.mxu0 0.0
      %342 = vmatprep.subr.mxu0 0.0
      %343 = vmatpush2.msra.mxu0 0.0
      %344 = vmatprep.subr.mxu0 0.0
      %345 = vmatpush2.msra.mxu0 0.0
      %346 = vmatprep.mubr.f32.mxu0 0.0
      %347 = vmatmul.mubr.f32.gmra.mxu0 %v231
      %v348 = vpop.f32.mrf.mxu0
      %v349 = vadd.f32 0.0, %v348
      %v350 = vpop.f32.mrf.mxu0
      %351 = vmatprep.mubr.f32.mxu0 0.0
      %352 = vmatmul.mubr.f32.gmra.mxu0 %v234
      %v353 = vpop.f32.mrf.mxu0
      %v354 = vadd.f32 0.0, %v353
      %v355 = vpop.f32.mrf.mxu0
      %356 = vmatprep.mubr.f32.mxu0 0.0
      %357 = vmatmul.mubr.f32.gmra.mxu0 %v237
      %v358 = vpop.f32.mrf.mxu0
      %v359 = vadd.f32 0.0, %v358
      %v360 = vpop.f32.mrf.mxu0
      %361 = vmatprep.mubr.f32.mxu0 0.0
      %362 = vmatmul.mubr.f32.gmra.mxu0 %v240
      %v363 = vpop.f32.mrf.mxu0
      %v364 = vadd.f32 0.0, %v363
      %v365 = vpop.f32.mrf.mxu0
      %366 = vmatprep.mubr.f32.mxu0 0.0
      %367 = vmatmul.mubr.f32.gmra.mxu0 %v243
      %v368 = vpop.f32.mrf.mxu0
      %v369 = vadd.f32 0.0, %v368
      %v370 = vpop.f32.mrf.mxu0
      %371 = vmatprep.mubr.f32.mxu0 0.0
      %372 = vmatmul.mubr.f32.gmra.mxu0 %v246
      %v373 = vpop.f32.mrf.mxu0
      %v374 = vadd.f32 0.0, %v373
      %v375 = vpop.f32.mrf.mxu0
      %376 = vmatprep.mubr.f32.mxu0 0.0
      %377 = vmatmul.mubr.f32.gmra.mxu0 %v249
      %v378 = vpop.f32.mrf.mxu0
      %v379 = vadd.f32 0.0, %v378
      %v380 = vpop.f32.mrf.mxu0
      %381 = vmatprep.mubr.f32.mxu0 0.0
      %382 = vmatmul.mubr.f32.gmra.mxu0 %v252
      %v383 = vpop.f32.mrf.mxu0
      %v384 = vadd.f32 0.0, %v383
      %v385 = vpop.f32.mrf.mxu0
      %386 = vmatprep.mubr.f32.mxu0 0.0
      %387 = vmatmul.mubr.f32.gmra.mxu0 %v255
      %v388 = vpop.f32.mrf.mxu0
      %v389 = vadd.f32 0.0, %v388
      %v390 = vpop.f32.mrf.mxu0
      %391 = vmatprep.mubr.f32.mxu0 0.0
      %392 = vmatmul.mubr.f32.gmra.mxu0 %v258
      %v393 = vpop.f32.mrf.mxu0
      %v394 = vadd.f32 0.0, %v393
      %v395 = vpop.f32.mrf.mxu0
      %396 = vmatprep.mubr.f32.mxu0 0.0
      %397 = vmatmul.mubr.f32.gmra.mxu0 %v261
      %v398 = vpop.f32.mrf.mxu0
      %v399 = vadd.f32 0.0, %v398
      %v400 = vpop.f32.mrf.mxu0
      %401 = vmatprep.mubr.f32.mxu0 0.0
      %402 = vmatmul.mubr.f32.gmra.mxu0 %v264
      %v403 = vpop.f32.mrf.mxu0
      %v404 = vadd.f32 0.0, %v403
      %v405 = vpop.f32.mrf.mxu0
      %406 = vmatprep.mubr.f32.mxu0 0.0
      %407 = vmatmul.mubr.f32.gmra.mxu0 %v267
      %v408 = vpop.f32.mrf.mxu0
      %v409 = vadd.f32 0.0, %v408
      %v410 = vpop.f32.mrf.mxu0
      %411 = vmatprep.mubr.f32.mxu0 0.0
      %412 = vmatmul.mubr.f32.gmra.mxu0 %v270
      %v413 = vpop.f32.mrf.mxu0
      %v414 = vadd.f32 0.0, %v413
      %v415 = vpop.f32.mrf.mxu0
      %416 = vmatprep.mubr.f32.mxu0 0.0
      %417 = vmatmul.mubr.f32.gmra.mxu0 %v273
      %v418 = vpop.f32.mrf.mxu0
      %v419 = vadd.f32 0.0, %v418
      %v420 = vpop.f32.mrf.mxu0
      %421 = vmatprep.mubr.f32.mxu0 0.0
      %422 = vmatmul.mubr.f32.gmra.mxu0 %v276
      %v423 = vpop.f32.mrf.mxu0
      %v424 = vadd.f32 0.0, %v423
      %v425 = vpop.f32.mrf.mxu0
      %426 = vdwg.mxu0
      %v427 = vtanh.pop %v349
      %v428 = vtanh.pop %v354
      %v429 = vtanh.pop %v359
      %v430 = vtanh.pop %v364
      %v431 = vtanh.pop %v369
      %v432 = vtanh.pop %v374
      %v433 = vtanh.pop %v379
      %v434 = vtanh.pop %v384
      %v435 = vtanh.pop %v389
      %v436 = vtanh.pop %v394
      %v437 = vtanh.pop %v399
      %v438 = vtanh.pop %v404
      %v439 = vtanh.pop %v409
      %v440 = vtanh.pop %v414
      %v441 = vtanh.pop %v419
      %v442 = vtanh.pop %v424
      %v443 = vld [vmem:[%s2 + $0x8] sm:$0xff]
      %v444 = vld [vmem:[%s2 + $0x10] sm:$0xff]
      %v445 = vld [vmem:[%s2 + $0x18] sm:$0xff]
      %v446 = vld [vmem:[%s2 + $0x20] sm:$0xff]
      %v447 = vld [vmem:[%s2 + $0x28] sm:$0x1]
      %v448 = vlaneseq
      %v449 = vshrl.u32 %v448, 7
      %v450 = vsub.s32 0, %v449
      %v451 = vrot.slane %v447, %v450
      %vm452 = vcmask 261120
      %v454 = vsel %vm452, %v427, 0
      %v457 = vsel %vm452, %v428, 0
      %v460 = vsel %vm452, %v429, 0
      %v463 = vsel %vm452, %v430, 0
      %v466 = vsel %vm452, %v431, 0
      %v469 = vsel %vm452, %v432, 0
      %v472 = vsel %vm452, %v433, 0
      %v475 = vsel %vm452, %v434, 0
      %v478 = vsel %vm452, %v435, 0
      %v481 = vsel %vm452, %v436, 0
      %v484 = vsel %vm452, %v437, 0
      %v487 = vsel %vm452, %v438, 0
      %v490 = vsel %vm452, %v439, 0
      %v493 = vsel %vm452, %v440, 0
      %v496 = vsel %vm452, %v441, 0
      %v499 = vsel %vm452, %v442, 0
      %501 = vmatprep.subr.mxu0 0.0
      %502 = vmatpush1.msra.mxu0 0.0
      %503 = vmatprep.subr.mxu0 0.0
      %504 = vmatpush1.msra.mxu0 0.0
      %505 = vmatprep.subr.mxu0 0.0
      %506 = vmatpush1.msra.mxu0 0.0
      %507 = vmatprep.subr.mxu0 0.0
      %508 = vmatpush1.msra.mxu0 0.0
      %509 = vmatprep.subr.mxu0 0.0
      %510 = vmatpush1.msra.mxu0 0.0
      %511 = vmatprep.subr.mxu0 0.0
      %512 = vmatpush1.msra.mxu0 0.0
      %513 = vmatprep.subr.mxu0 0.0
      %514 = vmatpush1.msra.mxu0 0.0
      %515 = vmatprep.subr.mxu0 0.0
      %516 = vmatpush1.msra.mxu0 0.0
      %517 = vmatprep.subr.mxu0 0.0
      %518 = vmatpush1.msra.mxu0 0.0
      %519 = vmatprep.subr.mxu0 0.0
      %520 = vmatpush1.msra.mxu0 0.0
      %521 = vmatprep.subr.mxu0 0.0
      %522 = vmatpush1.msra.mxu0 0.0
      %523 = vmatprep.subr.mxu0 0.0
      %524 = vmatpush1.msra.mxu0 0.0
      %525 = vmatprep.subr.mxu0 0.0
      %526 = vmatpush1.msra.mxu0 %v446
      %527 = vmatprep.subr.mxu0 0.0
      %528 = vmatpush1.msra.mxu0 %v445
      %529 = vmatprep.subr.mxu0 0.0
      %530 = vmatpush1.msra.mxu0 %v444
      %531 = vmatprep.subr.mxu0 0.0
      %532 = vmatpush1.msra.mxu0 %v443
      %533 = vmatprep.subr.mxu0 0.0
      %534 = vmatpush2.msra.mxu0 0.0
      %535 = vmatprep.subr.mxu0 0.0
      %536 = vmatpush2.msra.mxu0 0.0
      %537 = vmatprep.subr.mxu0 0.0
      %538 = vmatpush2.msra.mxu0 0.0
      %539 = vmatprep.subr.mxu0 0.0
      %540 = vmatpush2.msra.mxu0 0.0
      %541 = vmatprep.subr.mxu0 0.0
      %542 = vmatpush2.msra.mxu0 0.0
      %543 = vmatprep.subr.mxu0 0.0
      %544 = vmatpush2.msra.mxu0 0.0
      %545 = vmatprep.subr.mxu0 0.0
      %546 = vmatpush2.msra.mxu0 0.0
      %547 = vmatprep.subr.mxu0 0.0
      %548 = vmatpush2.msra.mxu0 0.0
      %549 = vmatprep.subr.mxu0 0.0
      %550 = vmatpush2.msra.mxu0 0.0
      %551 = vmatprep.subr.mxu0 0.0
      %552 = vmatpush2.msra.mxu0 0.0
      %553 = vmatprep.subr.mxu0 0.0
      %554 = vmatpush2.msra.mxu0 0.0
      %555 = vmatprep.subr.mxu0 0.0
      %556 = vmatpush2.msra.mxu0 0.0
      %557 = vmatprep.subr.mxu0 0.0
      %558 = vmatpush2.msra.mxu0 0.0
      %559 = vmatprep.subr.mxu0 0.0
      %560 = vmatpush2.msra.mxu0 0.0
      %561 = vmatprep.subr.mxu0 0.0
      %562 = vmatpush2.msra.mxu0 0.0
      %563 = vmatprep.subr.mxu0 0.0
      %564 = vmatpush2.msra.mxu0 0.0
      %565 = vmatprep.mubr.f32.mxu0 0.0
      %566 = vmatmul.mubr.f32.gmra.mxu0 %v454
      %v567 = vpop.f32.mrf.mxu0
      %v568 = vadd.f32 %v451, %v567
      %v569 = vpop.f32.mrf.mxu0
      %570 = vmatprep.mubr.f32.mxu0 0.0
      %571 = vmatmul.mubr.f32.gmra.mxu0 %v457
      %v572 = vpop.f32.mrf.mxu0
      %v573 = vadd.f32 %v451, %v572
      %v574 = vpop.f32.mrf.mxu0
      %575 = vmatprep.mubr.f32.mxu0 0.0
      %576 = vmatmul.mubr.f32.gmra.mxu0 %v460
      %v577 = vpop.f32.mrf.mxu0
      %v578 = vadd.f32 %v451, %v577
      %v579 = vpop.f32.mrf.mxu0
      %580 = vmatprep.mubr.f32.mxu0 0.0
      %581 = vmatmul.mubr.f32.gmra.mxu0 %v463
      %v582 = vpop.f32.mrf.mxu0
      %v583 = vadd.f32 %v451, %v582
      %v584 = vpop.f32.mrf.mxu0
      %585 = vmatprep.mubr.f32.mxu0 0.0
      %586 = vmatmul.mubr.f32.gmra.mxu0 %v466
      %v587 = vpop.f32.mrf.mxu0
      %v588 = vadd.f32 %v451, %v587
      %v589 = vpop.f32.mrf.mxu0
      %590 = vmatprep.mubr.f32.mxu0 0.0
      %591 = vmatmul.mubr.f32.gmra.mxu0 %v469
      %v592 = vpop.f32.mrf.mxu0
      %v593 = vadd.f32 %v451, %v592
      %v594 = vpop.f32.mrf.mxu0
      %595 = vmatprep.mubr.f32.mxu0 0.0
      %596 = vmatmul.mubr.f32.gmra.mxu0 %v472
      %v597 = vpop.f32.mrf.mxu0
      %v598 = vadd.f32 %v451, %v597
      %v599 = vpop.f32.mrf.mxu0
      %600 = vmatprep.mubr.f32.mxu0 0.0
      %601 = vmatmul.mubr.f32.gmra.mxu0 %v475
      %v602 = vpop.f32.mrf.mxu0
      %v603 = vadd.f32 %v451, %v602
      %v604 = vpop.f32.mrf.mxu0
      %605 = vmatprep.mubr.f32.mxu0 0.0
      %606 = vmatmul.mubr.f32.gmra.mxu0 %v478
      %v607 = vpop.f32.mrf.mxu0
      %v608 = vadd.f32 %v451, %v607
      %v609 = vpop.f32.mrf.mxu0
      %610 = vmatprep.mubr.f32.mxu0 0.0
      %611 = vmatmul.mubr.f32.gmra.mxu0 %v481
      %v612 = vpop.f32.mrf.mxu0
      %v613 = vadd.f32 %v451, %v612
      %v614 = vpop.f32.mrf.mxu0
      %615 = vmatprep.mubr.f32.mxu0 0.0
      %616 = vmatmul.mubr.f32.gmra.mxu0 %v484
      %v617 = vpop.f32.mrf.mxu0
      %v618 = vadd.f32 %v451, %v617
      %v619 = vpop.f32.mrf.mxu0
      %620 = vmatprep.mubr.f32.mxu0 0.0
      %621 = vmatmul.mubr.f32.gmra.mxu0 %v487
      %v622 = vpop.f32.mrf.mxu0
      %v623 = vadd.f32 %v451, %v622
      %v624 = vpop.f32.mrf.mxu0
      %625 = vmatprep.mubr.f32.mxu0 0.0
      %626 = vmatmul.mubr.f32.gmra.mxu0 %v490
      %v627 = vpop.f32.mrf.mxu0
      %v628 = vadd.f32 %v451, %v627
      %v629 = vpop.f32.mrf.mxu0
      %630 = vmatprep.mubr.f32.mxu0 0.0
      %631 = vmatmul.mubr.f32.gmra.mxu0 %v493
      %v632 = vpop.f32.mrf.mxu0
      %v633 = vadd.f32 %v451, %v632
      %v634 = vpop.f32.mrf.mxu0
      %635 = vmatprep.mubr.f32.mxu0 0.0
      %636 = vmatmul.mubr.f32.gmra.mxu0 %v496
      %v637 = vpop.f32.mrf.mxu0
      %v638 = vadd.f32 %v451, %v637
      %v639 = vpop.f32.mrf.mxu0
      %640 = vmatprep.mubr.f32.mxu0 0.0
      %641 = vmatmul.mubr.f32.gmra.mxu0 %v499
      %v642 = vpop.f32.mrf.mxu0
      %v643 = vadd.f32 %v451, %v642
      %v644 = vpop.f32.mrf.mxu0
      %645 = vdwg.mxu0
      %v646 = vtanh.pop %v568
      %v647 = vtanh.pop %v573
      %v648 = vtanh.pop %v578
      %v649 = vtanh.pop %v583
      %v650 = vtanh.pop %v588
      %v651 = vtanh.pop %v593
      %v652 = vtanh.pop %v598
      %v653 = vtanh.pop %v603
      %v654 = vtanh.pop %v608
      %v655 = vtanh.pop %v613
      %v656 = vtanh.pop %v618
      %v657 = vtanh.pop %v623
      %v658 = vtanh.pop %v628
      %v659 = vtanh.pop %v633
      %v660 = vtanh.pop %v638
      %v661 = vtanh.pop %v643
      %v662 = vld [vmem:[%s2 + $0x30] sm:$0xff]
      %v663 = vld [vmem:[%s2 + $0x38] sm:$0xff]
      %v664 = vld [vmem:[%s2 + $0x40] sm:$0x1]
      %v665 = vlaneseq
      %v666 = vshrl.u32 %v665, 7
      %v667 = vsub.s32 0, %v666
      %v668 = vrot.slane %v664, %v667
      %vm669 = vcmask 130048
      %v671 = vsel %vm669, %v646, 0
      %v674 = vsel %vm669, %v647, 0
      %v677 = vsel %vm669, %v648, 0
      %v680 = vsel %vm669, %v649, 0
      %v683 = vsel %vm669, %v650, 0
      %v686 = vsel %vm669, %v651, 0
      %v689 = vsel %vm669, %v652, 0
      %v692 = vsel %vm669, %v653, 0
      %v695 = vsel %vm669, %v654, 0
      %v698 = vsel %vm669, %v655, 0
      %v701 = vsel %vm669, %v656, 0
      %v704 = vsel %vm669, %v657, 0
      %v707 = vsel %vm669, %v658, 0
      %v710 = vsel %vm669, %v659, 0
      %v713 = vsel %vm669, %v660, 0
      %v716 = vsel %vm669, %v661, 0
      %718 = vmatprep.subr.mxu0 0.0
      %719 = vmatpush1.msra.mxu0 0.0
      %720 = vmatprep.subr.mxu0 0.0
      %721 = vmatpush1.msra.mxu0 0.0
      %722 = vmatprep.subr.mxu0 0.0
      %723 = vmatpush1.msra.mxu0 0.0
      %724 = vmatprep.subr.mxu0 0.0
      %725 = vmatpush1.msra.mxu0 0.0
      %726 = vmatprep.subr.mxu0 0.0
      %727 = vmatpush1.msra.mxu0 0.0
      %728 = vmatprep.subr.mxu0 0.0
      %729 = vmatpush1.msra.mxu0 0.0
      %730 = vmatprep.subr.mxu0 0.0
      %731 = vmatpush1.msra.mxu0 0.0
      %732 = vmatprep.subr.mxu0 0.0
      %733 = vmatpush1.msra.mxu0 0.0
      %734 = vmatprep.subr.mxu0 0.0
      %735 = vmatpush1.msra.mxu0 0.0
      %736 = vmatprep.subr.mxu0 0.0
      %737 = vmatpush1.msra.mxu0 0.0
      %738 = vmatprep.subr.mxu0 0.0
      %739 = vmatpush1.msra.mxu0 0.0
      %740 = vmatprep.subr.mxu0 0.0
      %741 = vmatpush1.msra.mxu0 0.0
      %742 = vmatprep.subr.mxu0 0.0
      %743 = vmatpush1.msra.mxu0 0.0
      %744 = vmatprep.subr.mxu0 0.0
      %745 = vmatpush1.msra.mxu0 0.0
      %746 = vmatprep.subr.mxu0 0.0
      %747 = vmatpush1.msra.mxu0 %v663
      %748 = vmatprep.subr.mxu0 0.0
      %749 = vmatpush1.msra.mxu0 %v662
      %750 = vmatprep.subr.mxu0 0.0
      %751 = vmatpush2.msra.mxu0 0.0
      %752 = vmatprep.subr.mxu0 0.0
      %753 = vmatpush2.msra.mxu0 0.0
      %754 = vmatprep.subr.mxu0 0.0
      %755 = vmatpush2.msra.mxu0 0.0
      %756 = vmatprep.subr.mxu0 0.0
      %757 = vmatpush2.msra.mxu0 0.0
      %758 = vmatprep.subr.mxu0 0.0
      %759 = vmatpush2.msra.mxu0 0.0
      %760 = vmatprep.subr.mxu0 0.0
      %761 = vmatpush2.msra.mxu0 0.0
      %762 = vmatprep.subr.mxu0 0.0
      %763 = vmatpush2.msra.mxu0 0.0
      %764 = vmatprep.subr.mxu0 0.0
      %765 = vmatpush2.msra.mxu0 0.0
      %766 = vmatprep.subr.mxu0 0.0
      %767 = vmatpush2.msra.mxu0 0.0
      %768 = vmatprep.subr.mxu0 0.0
      %769 = vmatpush2.msra.mxu0 0.0
      %770 = vmatprep.subr.mxu0 0.0
      %771 = vmatpush2.msra.mxu0 0.0
      %772 = vmatprep.subr.mxu0 0.0
      %773 = vmatpush2.msra.mxu0 0.0
      %774 = vmatprep.subr.mxu0 0.0
      %775 = vmatpush2.msra.mxu0 0.0
      %776 = vmatprep.subr.mxu0 0.0
      %777 = vmatpush2.msra.mxu0 0.0
      %778 = vmatprep.subr.mxu0 0.0
      %779 = vmatpush2.msra.mxu0 0.0
      %780 = vmatprep.subr.mxu0 0.0
      %781 = vmatpush2.msra.mxu0 0.0
      %782 = vmatprep.mubr.f32.mxu0 0.0
      %783 = vmatmul.mubr.f32.gmra.mxu0 %v671
      %v784 = vpop.f32.mrf.mxu0
      %v785 = vadd.f32 %v668, %v784
      %v786 = vpop.f32.mrf.mxu0
      %787 = vmatprep.mubr.f32.mxu0 0.0
      %788 = vmatmul.mubr.f32.gmra.mxu0 %v674
      %v789 = vpop.f32.mrf.mxu0
      %v790 = vadd.f32 %v668, %v789
      %v791 = vpop.f32.mrf.mxu0
      %792 = vmatprep.mubr.f32.mxu0 0.0
      %793 = vmatmul.mubr.f32.gmra.mxu0 %v677
      %v794 = vpop.f32.mrf.mxu0
      %v795 = vadd.f32 %v668, %v794
      %v796 = vpop.f32.mrf.mxu0
      %797 = vmatprep.mubr.f32.mxu0 0.0
      %798 = vmatmul.mubr.f32.gmra.mxu0 %v680
      %v799 = vpop.f32.mrf.mxu0
      %v800 = vadd.f32 %v668, %v799
      %v801 = vpop.f32.mrf.mxu0
      %802 = vmatprep.mubr.f32.mxu0 0.0
      %803 = vmatmul.mubr.f32.gmra.mxu0 %v683
      %v804 = vpop.f32.mrf.mxu0
      %v805 = vadd.f32 %v668, %v804
      %v806 = vpop.f32.mrf.mxu0
      %807 = vmatprep.mubr.f32.mxu0 0.0
      %808 = vmatmul.mubr.f32.gmra.mxu0 %v686
      %v809 = vpop.f32.mrf.mxu0
      %v810 = vadd.f32 %v668, %v809
      %v811 = vpop.f32.mrf.mxu0
      %812 = vmatprep.mubr.f32.mxu0 0.0
      %813 = vmatmul.mubr.f32.gmra.mxu0 %v689
      %v814 = vpop.f32.mrf.mxu0
      %v815 = vadd.f32 %v668, %v814
      %v816 = vpop.f32.mrf.mxu0
      %817 = vmatprep.mubr.f32.mxu0 0.0
      %818 = vmatmul.mubr.f32.gmra.mxu0 %v692
      %v819 = vpop.f32.mrf.mxu0
      %v820 = vadd.f32 %v668, %v819
      %v821 = vpop.f32.mrf.mxu0
      %822 = vmatprep.mubr.f32.mxu0 0.0
      %823 = vmatmul.mubr.f32.gmra.mxu0 %v695
      %v824 = vpop.f32.mrf.mxu0
      %v825 = vadd.f32 %v668, %v824
      %v826 = vpop.f32.mrf.mxu0
      %827 = vmatprep.mubr.f32.mxu0 0.0
      %828 = vmatmul.mubr.f32.gmra.mxu0 %v698
      %v829 = vpop.f32.mrf.mxu0
      %v830 = vadd.f32 %v668, %v829
      %v831 = vpop.f32.mrf.mxu0
      %832 = vmatprep.mubr.f32.mxu0 0.0
      %833 = vmatmul.mubr.f32.gmra.mxu0 %v701
      %v834 = vpop.f32.mrf.mxu0
      %v835 = vadd.f32 %v668, %v834
      %v836 = vpop.f32.mrf.mxu0
      %837 = vmatprep.mubr.f32.mxu0 0.0
      %838 = vmatmul.mubr.f32.gmra.mxu0 %v704
      %v839 = vpop.f32.mrf.mxu0
      %v840 = vadd.f32 %v668, %v839
      %v841 = vpop.f32.mrf.mxu0
      %842 = vmatprep.mubr.f32.mxu0 0.0
      %843 = vmatmul.mubr.f32.gmra.mxu0 %v707
      %v844 = vpop.f32.mrf.mxu0
      %v845 = vadd.f32 %v668, %v844
      %v846 = vpop.f32.mrf.mxu0
      %847 = vmatprep.mubr.f32.mxu0 0.0
      %848 = vmatmul.mubr.f32.gmra.mxu0 %v710
      %v849 = vpop.f32.mrf.mxu0
      %v850 = vadd.f32 %v668, %v849
      %v851 = vpop.f32.mrf.mxu0
      %852 = vmatprep.mubr.f32.mxu0 0.0
      %853 = vmatmul.mubr.f32.gmra.mxu0 %v713
      %v854 = vpop.f32.mrf.mxu0
      %v855 = vadd.f32 %v668, %v854
      %v856 = vpop.f32.mrf.mxu0
      %857 = vmatprep.mubr.f32.mxu0 0.0
      %858 = vmatmul.mubr.f32.gmra.mxu0 %v716
      %v859 = vpop.f32.mrf.mxu0
      %v860 = vadd.f32 %v668, %v859
      %v861 = vpop.f32.mrf.mxu0
      %862 = vdwg.mxu0
      %v863 = vtanh.pop %v785
      %v864 = vtanh.pop %v790
      %v865 = vtanh.pop %v795
      %v866 = vtanh.pop %v800
      %v867 = vtanh.pop %v805
      %v868 = vtanh.pop %v810
      %v869 = vtanh.pop %v815
      %v870 = vtanh.pop %v820
      %v871 = vtanh.pop %v825
      %v872 = vtanh.pop %v830
      %v873 = vtanh.pop %v835
      %v874 = vtanh.pop %v840
      %v875 = vtanh.pop %v845
      %v876 = vtanh.pop %v850
      %v877 = vtanh.pop %v855
      %v878 = vtanh.pop %v860
      %v879 = vld [vmem:[%s2 + $0x48] sm:$0xff]
      %v880 = vld [vmem:[%s2 + $0x50] sm:$0xff]
      %v881 = vld [vmem:[%s2 + $0x58] sm:$0xff]
      %v882 = vld [vmem:[%s2 + $0x60] sm:$0xff]
      %v883 = vld [vmem:[%s2 + $0x68] sm:$0xff]
      %v884 = vld [vmem:[%s2 + $0x70] sm:$0xff]
      %v885 = vld [vmem:[%s2 + $0x78] sm:$0xff]
      %v886 = vld [vmem:[%s2 + $0x80] sm:$0x1]
      %v887 = vlaneseq
      %v888 = vshrl.u32 %v887, 7
      %v889 = vsub.s32 0, %v888
      %v890 = vrot.slane %v886, %v889
      %vm891 = vcmask 457728
      %v893 = vsel %vm891, %v863, 0
      %v896 = vsel %vm891, %v864, 0
      %v899 = vsel %vm891, %v865, 0
      %v902 = vsel %vm891, %v866, 0
      %v905 = vsel %vm891, %v867, 0
      %v908 = vsel %vm891, %v868, 0
      %v911 = vsel %vm891, %v869, 0
      %v914 = vsel %vm891, %v870, 0
      %v917 = vsel %vm891, %v871, 0
      %v920 = vsel %vm891, %v872, 0
      %v923 = vsel %vm891, %v873, 0
      %v926 = vsel %vm891, %v874, 0
      %v929 = vsel %vm891, %v875, 0
      %v932 = vsel %vm891, %v876, 0
      %v935 = vsel %vm891, %v877, 0
      %v938 = vsel %vm891, %v878, 0
      %940 = vmatprep.subr.mxu0 0.0
      %941 = vmatpush1.msra.mxu0 0.0
      %942 = vmatprep.subr.mxu0 0.0
      %943 = vmatpush1.msra.mxu0 0.0
      %944 = vmatprep.subr.mxu0 0.0
      %945 = vmatpush1.msra.mxu0 0.0
      %946 = vmatprep.subr.mxu0 0.0
      %947 = vmatpush1.msra.mxu0 0.0
      %948 = vmatprep.subr.mxu0 0.0
      %949 = vmatpush1.msra.mxu0 0.0
      %950 = vmatprep.subr.mxu0 0.0
      %951 = vmatpush1.msra.mxu0 0.0
      %952 = vmatprep.subr.mxu0 0.0
      %953 = vmatpush1.msra.mxu0 0.0
      %954 = vmatprep.subr.mxu0 0.0
      %955 = vmatpush1.msra.mxu0 0.0
      %956 = vmatprep.subr.mxu0 0.0
      %957 = vmatpush1.msra.mxu0 0.0
      %958 = vmatprep.subr.mxu0 0.0
      %959 = vmatpush1.msra.mxu0 %v885
      %960 = vmatprep.subr.mxu0 0.0
      %961 = vmatpush1.msra.mxu0 %v884
      %962 = vmatprep.subr.mxu0 0.0
      %963 = vmatpush1.msra.mxu0 %v883
      %964 = vmatprep.subr.mxu0 0.0
      %965 = vmatpush1.msra.mxu0 %v882
      %966 = vmatprep.subr.mxu0 0.0
      %967 = vmatpush1.msra.mxu0 %v881
      %968 = vmatprep.subr.mxu0 0.0
      %969 = vmatpush1.msra.mxu0 %v880
      %970 = vmatprep.subr.mxu0 0.0
      %971 = vmatpush1.msra.mxu0 %v879
      %972 = vmatprep.subr.mxu0 0.0
      %973 = vmatpush2.msra.mxu0 0.0
      %974 = vmatprep.subr.mxu0 0.0
      %975 = vmatpush2.msra.mxu0 0.0
      %976 = vmatprep.subr.mxu0 0.0
      %977 = vmatpush2.msra.mxu0 0.0
      %978 = vmatprep.subr.mxu0 0.0
      %979 = vmatpush2.msra.mxu0 0.0
      %980 = vmatprep.subr.mxu0 0.0
      %981 = vmatpush2.msra.mxu0 0.0
      %982 = vmatprep.subr.mxu0 0.0
      %983 = vmatpush2.msra.mxu0 0.0
      %984 = vmatprep.subr.mxu0 0.0
      %985 = vmatpush2.msra.mxu0 0.0
      %986 = vmatprep.subr.mxu0 0.0
      %987 = vmatpush2.msra.mxu0 0.0
      %988 = vmatprep.subr.mxu0 0.0
      %989 = vmatpush2.msra.mxu0 0.0
      %990 = vmatprep.subr.mxu0 0.0
      %991 = vmatpush2.msra.mxu0 0.0
      %992 = vmatprep.subr.mxu0 0.0
      %993 = vmatpush2.msra.mxu0 0.0
      %994 = vmatprep.subr.mxu0 0.0
      %995 = vmatpush2.msra.mxu0 0.0
      %996 = vmatprep.subr.mxu0 0.0
      %997 = vmatpush2.msra.mxu0 0.0
      %998 = vmatprep.subr.mxu0 0.0
      %999 = vmatpush2.msra.mxu0 0.0
      %1000 = vmatprep.subr.mxu0 0.0
      %1001 = vmatpush2.msra.mxu0 0.0
      %1002 = vmatprep.subr.mxu0 0.0
      %1003 = vmatpush2.msra.mxu0 0.0
      %1004 = vmatprep.mubr.f32.mxu0 0.0
      %1005 = vmatmul.mubr.f32.gmra.mxu0 %v893
      %v1006 = vpop.f32.mrf.mxu0
      %v1007 = vadd.f32 %v890, %v1006
      %v1008 = vpop.f32.mrf.mxu0
      %1009 = vmatprep.mubr.f32.mxu0 0.0
      %1010 = vmatmul.mubr.f32.gmra.mxu0 %v896
      %v1011 = vpop.f32.mrf.mxu0
      %v1012 = vadd.f32 %v890, %v1011
      %v1013 = vpop.f32.mrf.mxu0
      %1014 = vmatprep.mubr.f32.mxu0 0.0
      %1015 = vmatmul.mubr.f32.gmra.mxu0 %v899
      %v1016 = vpop.f32.mrf.mxu0
      %v1017 = vadd.f32 %v890, %v1016
      %v1018 = vpop.f32.mrf.mxu0
      %1019 = vmatprep.mubr.f32.mxu0 0.0
      %1020 = vmatmul.mubr.f32.gmra.mxu0 %v902
      %v1021 = vpop.f32.mrf.mxu0
      %v1022 = vadd.f32 %v890, %v1021
      %v1023 = vpop.f32.mrf.mxu0
      %1024 = vmatprep.mubr.f32.mxu0 0.0
      %1025 = vmatmul.mubr.f32.gmra.mxu0 %v905
      %v1026 = vpop.f32.mrf.mxu0
      %v1027 = vadd.f32 %v890, %v1026
      %v1028 = vpop.f32.mrf.mxu0
      %1029 = vmatprep.mubr.f32.mxu0 0.0
      %1030 = vmatmul.mubr.f32.gmra.mxu0 %v908
      %v1031 = vpop.f32.mrf.mxu0
      %v1032 = vadd.f32 %v890, %v1031
      %v1033 = vpop.f32.mrf.mxu0
      %1034 = vmatprep.mubr.f32.mxu0 0.0
      %1035 = vmatmul.mubr.f32.gmra.mxu0 %v911
      %v1036 = vpop.f32.mrf.mxu0
      %v1037 = vadd.f32 %v890, %v1036
      %v1038 = vpop.f32.mrf.mxu0
      %1039 = vmatprep.mubr.f32.mxu0 0.0
      %1040 = vmatmul.mubr.f32.gmra.mxu0 %v914
      %v1041 = vpop.f32.mrf.mxu0
      %v1042 = vadd.f32 %v890, %v1041
      %v1043 = vpop.f32.mrf.mxu0
      %1044 = vmatprep.mubr.f32.mxu0 0.0
      %1045 = vmatmul.mubr.f32.gmra.mxu0 %v917
      %v1046 = vpop.f32.mrf.mxu0
      %v1047 = vadd.f32 %v890, %v1046
      %v1048 = vpop.f32.mrf.mxu0
      %1049 = vmatprep.mubr.f32.mxu0 0.0
      %1050 = vmatmul.mubr.f32.gmra.mxu0 %v920
      %v1051 = vpop.f32.mrf.mxu0
      %v1052 = vadd.f32 %v890, %v1051
      %v1053 = vpop.f32.mrf.mxu0
      %1054 = vmatprep.mubr.f32.mxu0 0.0
      %1055 = vmatmul.mubr.f32.gmra.mxu0 %v923
      %v1056 = vpop.f32.mrf.mxu0
      %v1057 = vadd.f32 %v890, %v1056
      %v1058 = vpop.f32.mrf.mxu0
      %1059 = vmatprep.mubr.f32.mxu0 0.0
      %1060 = vmatmul.mubr.f32.gmra.mxu0 %v926
      %v1061 = vpop.f32.mrf.mxu0
      %v1062 = vadd.f32 %v890, %v1061
      %v1063 = vpop.f32.mrf.mxu0
      %1064 = vmatprep.mubr.f32.mxu0 0.0
      %1065 = vmatmul.mubr.f32.gmra.mxu0 %v929
      %v1066 = vpop.f32.mrf.mxu0
      %v1067 = vadd.f32 %v890, %v1066
      %v1068 = vpop.f32.mrf.mxu0
      %1069 = vmatprep.mubr.f32.mxu0 0.0
      %1070 = vmatmul.mubr.f32.gmra.mxu0 %v932
      %v1071 = vpop.f32.mrf.mxu0
      %v1072 = vadd.f32 %v890, %v1071
      %v1073 = vpop.f32.mrf.mxu0
      %1074 = vmatprep.mubr.f32.mxu0 0.0
      %1075 = vmatmul.mubr.f32.gmra.mxu0 %v935
      %v1076 = vpop.f32.mrf.mxu0
      %v1077 = vadd.f32 %v890, %v1076
      %v1078 = vpop.f32.mrf.mxu0
      %1079 = vmatprep.mubr.f32.mxu0 0.0
      %1080 = vmatmul.mubr.f32.gmra.mxu0 %v938
      %v1081 = vpop.f32.mrf.mxu0
      %v1082 = vadd.f32 %v890, %v1081
      %v1083 = vpop.f32.mrf.mxu0
      %1084 = vdwg.mxu0
      %v1085 = vtanh.pop %v1007
      %v1086 = vtanh.pop %v1012
      %v1087 = vtanh.pop %v1017
      %v1088 = vtanh.pop %v1022
      %v1089 = vtanh.pop %v1027
      %v1090 = vtanh.pop %v1032
      %v1091 = vtanh.pop %v1037
      %v1092 = vtanh.pop %v1042
      %v1093 = vtanh.pop %v1047
      %v1094 = vtanh.pop %v1052
      %v1095 = vtanh.pop %v1057
      %v1096 = vtanh.pop %v1062
      %v1097 = vtanh.pop %v1067
      %v1098 = vtanh.pop %v1072
      %v1099 = vtanh.pop %v1077
      %v1100 = vtanh.pop %v1082
      %v1101 = vld [vmem:[%s2 + $0x88] sm:$0xff]
      %v1102 = vld [vmem:[%s2 + $0x90] sm:$0xff]
      %v1103 = vld [vmem:[%s2 + $0x98] sm:$0xff]
      %v1104 = vld [vmem:[%s2 + $0xa0] sm:$0xff]
      %v1105 = vld [vmem:[%s2 + $0xa8] sm:$0x1]
      %v1106 = vlaneseq
      %v1107 = vshrl.u32 %v1106, 7
      %v1108 = vsub.s32 0, %v1107
      %v1109 = vrot.slane %v1105, %v1108
      %v1111 = vsel %vm452, %v1085, 0
      %v1114 = vsel %vm452, %v1086, 0
      %v1117 = vsel %vm452, %v1087, 0
      %v1120 = vsel %vm452, %v1088, 0
      %v1123 = vsel %vm452, %v1089, 0
      %v1126 = vsel %vm452, %v1090, 0
      %v1129 = vsel %vm452, %v1091, 0
      %v1132 = vsel %vm452, %v1092, 0
      %v1135 = vsel %vm452, %v1093, 0
      %v1138 = vsel %vm452, %v1094, 0
      %v1141 = vsel %vm452, %v1095, 0
      %v1144 = vsel %vm452, %v1096, 0
      %v1147 = vsel %vm452, %v1097, 0
      %v1150 = vsel %vm452, %v1098, 0
      %v1153 = vsel %vm452, %v1099, 0
      %v1156 = vsel %vm452, %v1100, 0
      %1158 = vmatprep.subr.mxu0 0.0
      %1159 = vmatpush1.msra.mxu0 0.0
      %1160 = vmatprep.subr.mxu0 0.0
      %1161 = vmatpush1.msra.mxu0 0.0
      %1162 = vmatprep.subr.mxu0 0.0
      %1163 = vmatpush1.msra.mxu0 0.0
      %1164 = vmatprep.subr.mxu0 0.0
      %1165 = vmatpush1.msra.mxu0 0.0
      %1166 = vmatprep.subr.mxu0 0.0
      %1167 = vmatpush1.msra.mxu0 0.0
      %1168 = vmatprep.subr.mxu0 0.0
      %1169 = vmatpush1.msra.mxu0 0.0
      %1170 = vmatprep.subr.mxu0 0.0
      %1171 = vmatpush1.msra.mxu0 0.0
      %1172 = vmatprep.subr.mxu0 0.0
      %1173 = vmatpush1.msra.mxu0 0.0
      %1174 = vmatprep.subr.mxu0 0.0
      %1175 = vmatpush1.msra.mxu0 0.0
      %1176 = vmatprep.subr.mxu0 0.0
      %1177 = vmatpush1.msra.mxu0 0.0
      %1178 = vmatprep.subr.mxu0 0.0
      %1179 = vmatpush1.msra.mxu0 0.0
      %1180 = vmatprep.subr.mxu0 0.0
      %1181 = vmatpush1.msra.mxu0 0.0
      %1182 = vmatprep.subr.mxu0 0.0
      %1183 = vmatpush1.msra.mxu0 %v1104
      %1184 = vmatprep.subr.mxu0 0.0
      %1185 = vmatpush1.msra.mxu0 %v1103
      %1186 = vmatprep.subr.mxu0 0.0
      %1187 = vmatpush1.msra.mxu0 %v1102
      %1188 = vmatprep.subr.mxu0 0.0
      %1189 = vmatpush1.msra.mxu0 %v1101
      %1190 = vmatprep.subr.mxu0 0.0
      %1191 = vmatpush2.msra.mxu0 0.0
      %1192 = vmatprep.subr.mxu0 0.0
      %1193 = vmatpush2.msra.mxu0 0.0
      %1194 = vmatprep.subr.mxu0 0.0
      %1195 = vmatpush2.msra.mxu0 0.0
      %1196 = vmatprep.subr.mxu0 0.0
      %1197 = vmatpush2.msra.mxu0 0.0
      %1198 = vmatprep.subr.mxu0 0.0
      %1199 = vmatpush2.msra.mxu0 0.0
      %1200 = vmatprep.subr.mxu0 0.0
      %1201 = vmatpush2.msra.mxu0 0.0
      %1202 = vmatprep.subr.mxu0 0.0
      %1203 = vmatpush2.msra.mxu0 0.0
      %1204 = vmatprep.subr.mxu0 0.0
      %1205 = vmatpush2.msra.mxu0 0.0
      %1206 = vmatprep.subr.mxu0 0.0
      %1207 = vmatpush2.msra.mxu0 0.0
      %1208 = vmatprep.subr.mxu0 0.0
      %1209 = vmatpush2.msra.mxu0 0.0
      %1210 = vmatprep.subr.mxu0 0.0
      %1211 = vmatpush2.msra.mxu0 0.0
      %1212 = vmatprep.subr.mxu0 0.0
      %1213 = vmatpush2.msra.mxu0 0.0
      %1214 = vmatprep.subr.mxu0 0.0
      %1215 = vmatpush2.msra.mxu0 0.0
      %1216 = vmatprep.subr.mxu0 0.0
      %1217 = vmatpush2.msra.mxu0 0.0
      %1218 = vmatprep.subr.mxu0 0.0
      %1219 = vmatpush2.msra.mxu0 0.0
      %1220 = vmatprep.subr.mxu0 0.0
      %1221 = vmatpush2.msra.mxu0 0.0
      %1222 = vmatprep.mubr.f32.mxu0 0.0
      %1223 = vmatmul.mubr.f32.gmra.mxu0 %v1111
      %v1224 = vpop.f32.mrf.mxu0
      %v1225 = vadd.f32 %v1109, %v1224
      %v1226 = vpop.f32.mrf.mxu0
      %1227 = vmatprep.mubr.f32.mxu0 0.0
      %1228 = vmatmul.mubr.f32.gmra.mxu0 %v1114
      %v1229 = vpop.f32.mrf.mxu0
      %v1230 = vadd.f32 %v1109, %v1229
      %v1231 = vpop.f32.mrf.mxu0
      %1232 = vmatprep.mubr.f32.mxu0 0.0
      %1233 = vmatmul.mubr.f32.gmra.mxu0 %v1117
      %v1234 = vpop.f32.mrf.mxu0
      %v1235 = vadd.f32 %v1109, %v1234
      %v1236 = vpop.f32.mrf.mxu0
      %1237 = vmatprep.mubr.f32.mxu0 0.0
      %1238 = vmatmul.mubr.f32.gmra.mxu0 %v1120
      %v1239 = vpop.f32.mrf.mxu0
      %v1240 = vadd.f32 %v1109, %v1239
      %v1241 = vpop.f32.mrf.mxu0
      %1242 = vmatprep.mubr.f32.mxu0 0.0
      %1243 = vmatmul.mubr.f32.gmra.mxu0 %v1123
      %v1244 = vpop.f32.mrf.mxu0
      %v1245 = vadd.f32 %v1109, %v1244
      %v1246 = vpop.f32.mrf.mxu0
      %1247 = vmatprep.mubr.f32.mxu0 0.0
      %1248 = vmatmul.mubr.f32.gmra.mxu0 %v1126
      %v1249 = vpop.f32.mrf.mxu0
      %v1250 = vadd.f32 %v1109, %v1249
      %v1251 = vpop.f32.mrf.mxu0
      %1252 = vmatprep.mubr.f32.mxu0 0.0
      %1253 = vmatmul.mubr.f32.gmra.mxu0 %v1129
      %v1254 = vpop.f32.mrf.mxu0
      %v1255 = vadd.f32 %v1109, %v1254
      %v1256 = vpop.f32.mrf.mxu0
      %1257 = vmatprep.mubr.f32.mxu0 0.0
      %1258 = vmatmul.mubr.f32.gmra.mxu0 %v1132
      %v1259 = vpop.f32.mrf.mxu0
      %v1260 = vadd.f32 %v1109, %v1259
      %v1261 = vpop.f32.mrf.mxu0
      %1262 = vmatprep.mubr.f32.mxu0 0.0
      %1263 = vmatmul.mubr.f32.gmra.mxu0 %v1135
      %v1264 = vpop.f32.mrf.mxu0
      %v1265 = vadd.f32 %v1109, %v1264
      %v1266 = vpop.f32.mrf.mxu0
      %1267 = vmatprep.mubr.f32.mxu0 0.0
      %1268 = vmatmul.mubr.f32.gmra.mxu0 %v1138
      %v1269 = vpop.f32.mrf.mxu0
      %v1270 = vadd.f32 %v1109, %v1269
      %v1271 = vpop.f32.mrf.mxu0
      %1272 = vmatprep.mubr.f32.mxu0 0.0
      %1273 = vmatmul.mubr.f32.gmra.mxu0 %v1141
      %v1274 = vpop.f32.mrf.mxu0
      %v1275 = vadd.f32 %v1109, %v1274
      %v1276 = vpop.f32.mrf.mxu0
      %1277 = vmatprep.mubr.f32.mxu0 0.0
      %1278 = vmatmul.mubr.f32.gmra.mxu0 %v1144
      %v1279 = vpop.f32.mrf.mxu0
      %v1280 = vadd.f32 %v1109, %v1279
      %v1281 = vpop.f32.mrf.mxu0
      %1282 = vmatprep.mubr.f32.mxu0 0.0
      %1283 = vmatmul.mubr.f32.gmra.mxu0 %v1147
      %v1284 = vpop.f32.mrf.mxu0
      %v1285 = vadd.f32 %v1109, %v1284
      %v1286 = vpop.f32.mrf.mxu0
      %1287 = vmatprep.mubr.f32.mxu0 0.0
      %1288 = vmatmul.mubr.f32.gmra.mxu0 %v1150
      %v1289 = vpop.f32.mrf.mxu0
      %v1290 = vadd.f32 %v1109, %v1289
      %v1291 = vpop.f32.mrf.mxu0
      %1292 = vmatprep.mubr.f32.mxu0 0.0
      %1293 = vmatmul.mubr.f32.gmra.mxu0 %v1153
      %v1294 = vpop.f32.mrf.mxu0
      %v1295 = vadd.f32 %v1109, %v1294
      %v1296 = vpop.f32.mrf.mxu0
      %1297 = vmatprep.mubr.f32.mxu0 0.0
      %1298 = vmatmul.mubr.f32.gmra.mxu0 %v1156
      %v1299 = vpop.f32.mrf.mxu0
      %v1300 = vadd.f32 %v1109, %v1299
      %v1301 = vpop.f32.mrf.mxu0
      %1302 = vdwg.mxu0
      %vm1303 = vcmask 31744
      %v1304 = vsel %vm1303, %v1225, -inf
      %1305 = vmax.xlane.f32.xlu0 %v1304
      %v1306 = vpop.xlane.xlu0 %1305
      %v1307 = vsel %vm1303, %v1230, -inf
      %1308 = vmax.xlane.f32.xlu0 %v1307
      %v1309 = vpop.xlane.xlu0 %1308
      %v1310 = vsel %vm1303, %v1235, -inf
      %1311 = vmax.xlane.f32.xlu0 %v1310
      %v1312 = vpop.xlane.xlu0 %1311
      %v1313 = vsel %vm1303, %v1240, -inf
      %1314 = vmax.xlane.f32.xlu0 %v1313
      %v1315 = vpop.xlane.xlu0 %1314
      %v1316 = vsel %vm1303, %v1245, -inf
      %1317 = vmax.xlane.f32.xlu0 %v1316
      %v1318 = vpop.xlane.xlu0 %1317
      %v1319 = vsel %vm1303, %v1250, -inf
      %1320 = vmax.xlane.f32.xlu0 %v1319
      %v1321 = vpop.xlane.xlu0 %1320
      %v1322 = vsel %vm1303, %v1255, -inf
      %1323 = vmax.xlane.f32.xlu0 %v1322
      %v1324 = vpop.xlane.xlu0 %1323
      %v1325 = vsel %vm1303, %v1260, -inf
      %1326 = vmax.xlane.f32.xlu0 %v1325
      %v1327 = vpop.xlane.xlu0 %1326
      %v1328 = vsel %vm1303, %v1265, -inf
      %1329 = vmax.xlane.f32.xlu0 %v1328
      %v1330 = vpop.xlane.xlu0 %1329
      %v1331 = vsel %vm1303, %v1270, -inf
      %1332 = vmax.xlane.f32.xlu0 %v1331
      %v1333 = vpop.xlane.xlu0 %1332
      %v1334 = vsel %vm1303, %v1275, -inf
      %1335 = vmax.xlane.f32.xlu0 %v1334
      %v1336 = vpop.xlane.xlu0 %1335
      %v1337 = vsel %vm1303, %v1280, -inf
      %1338 = vmax.xlane.f32.xlu0 %v1337
      %v1339 = vpop.xlane.xlu0 %1338
      %v1340 = vsel %vm1303, %v1285, -inf
      %1341 = vmax.xlane.f32.xlu0 %v1340
      %v1342 = vpop.xlane.xlu0 %1341
      %v1343 = vsel %vm1303, %v1290, -inf
      %1344 = vmax.xlane.f32.xlu0 %v1343
      %v1345 = vpop.xlane.xlu0 %1344
      %v1346 = vsel %vm1303, %v1295, -inf
      %1347 = vmax.xlane.f32.xlu0 %v1346
      %v1348 = vpop.xlane.xlu0 %1347
      %v1349 = vsel %vm1303, %v1300, -inf
      %1350 = vmax.xlane.f32.xlu0 %v1349
      %v1351 = vpop.xlane.xlu0 %1350
      %v1352 = vsub.f32 %v1225, %v1306
      %v1353 = vsub.f32 %v1230, %v1309
      %v1354 = vsub.f32 %v1235, %v1312
      %v1355 = vsub.f32 %v1240, %v1315
      %v1356 = vsub.f32 %v1245, %v1318
      %v1357 = vsub.f32 %v1250, %v1321
      %v1358 = vsub.f32 %v1255, %v1324
      %v1359 = vsub.f32 %v1260, %v1327
      %v1360 = vsub.f32 %v1265, %v1330
      %v1361 = vsub.f32 %v1270, %v1333
      %v1362 = vsub.f32 %v1275, %v1336
      %v1363 = vsub.f32 %v1280, %v1339
      %v1364 = vsub.f32 %v1285, %v1342
      %v1365 = vsub.f32 %v1290, %v1345
      %v1366 = vsub.f32 %v1295, %v1348
      %v1367 = vsub.f32 %v1300, %v1351
      %v1368 = vmul.f32 %v1352, 1.442695
      %v1369 = vpow.pop %v1368
      %v1370 = vmul.f32 %v1353, 1.442695
      %v1371 = vpow.pop %v1370
      %v1372 = vmul.f32 %v1354, 1.442695
      %v1373 = vpow.pop %v1372
      %v1374 = vmul.f32 %v1355, 1.442695
      %v1375 = vpow.pop %v1374
      %v1376 = vmul.f32 %v1356, 1.442695
      %v1377 = vpow.pop %v1376
      %v1378 = vmul.f32 %v1357, 1.442695
      %v1379 = vpow.pop %v1378
      %v1380 = vmul.f32 %v1358, 1.442695
      %v1381 = vpow.pop %v1380
      %v1382 = vmul.f32 %v1359, 1.442695
      %v1383 = vpow.pop %v1382
      %v1384 = vmul.f32 %v1360, 1.442695
      %v1385 = vpow.pop %v1384
      %v1386 = vmul.f32 %v1361, 1.442695
      %v1387 = vpow.pop %v1386
      %v1388 = vmul.f32 %v1362, 1.442695
      %v1389 = vpow.pop %v1388
      %v1390 = vmul.f32 %v1363, 1.442695
      %v1391 = vpow.pop %v1390
      %v1392 = vmul.f32 %v1364, 1.442695
      %v1393 = vpow.pop %v1392
      %v1394 = vmul.f32 %v1365, 1.442695
      %v1395 = vpow.pop %v1394
      %v1396 = vmul.f32 %v1366, 1.442695
      %v1397 = vpow.pop %v1396
      %v1398 = vmul.f32 %v1367, 1.442695
      %v1399 = vpow.pop %v1398
      %v1400 = vsel %vm1303, %v1369, 0.0
      %1401 = vadd.xlane.f32.xlu0 %v1400
      %v1402 = vpop.xlane.xlu0 %1401
      %v1403 = vsel %vm1303, %v1371, 0.0
      %1404 = vadd.xlane.f32.xlu0 %v1403
      %v1405 = vpop.xlane.xlu0 %1404
      %v1406 = vsel %vm1303, %v1373, 0.0
      %1407 = vadd.xlane.f32.xlu0 %v1406
      %v1408 = vpop.xlane.xlu0 %1407
      %v1409 = vsel %vm1303, %v1375, 0.0
      %1410 = vadd.xlane.f32.xlu0 %v1409
      %v1411 = vpop.xlane.xlu0 %1410
      %v1412 = vsel %vm1303, %v1377, 0.0
      %1413 = vadd.xlane.f32.xlu0 %v1412
      %v1414 = vpop.xlane.xlu0 %1413
      %v1415 = vsel %vm1303, %v1379, 0.0
      %1416 = vadd.xlane.f32.xlu0 %v1415
      %v1417 = vpop.xlane.xlu0 %1416
      %v1418 = vsel %vm1303, %v1381, 0.0
      %1419 = vadd.xlane.f32.xlu0 %v1418
      %v1420 = vpop.xlane.xlu0 %1419
      %v1421 = vsel %vm1303, %v1383, 0.0
      %1422 = vadd.xlane.f32.xlu0 %v1421
      %v1423 = vpop.xlane.xlu0 %1422
      %v1424 = vsel %vm1303, %v1385, 0.0
      %1425 = vadd.xlane.f32.xlu0 %v1424
      %v1426 = vpop.xlane.xlu0 %1425
      %v1427 = vsel %vm1303, %v1387, 0.0
      %1428 = vadd.xlane.f32.xlu0 %v1427
      %v1429 = vpop.xlane.xlu0 %1428
      %v1430 = vsel %vm1303, %v1389, 0.0
      %1431 = vadd.xlane.f32.xlu0 %v1430
      %v1432 = vpop.xlane.xlu0 %1431
      %v1433 = vsel %vm1303, %v1391, 0.0
      %1434 = vadd.xlane.f32.xlu0 %v1433
      %v1435 = vpop.xlane.xlu0 %1434
      %v1436 = vsel %vm1303, %v1393, 0.0
      %1437 = vadd.xlane.f32.xlu0 %v1436
      %v1438 = vpop.xlane.xlu0 %1437
      %v1439 = vsel %vm1303, %v1395, 0.0
      %1440 = vadd.xlane.f32.xlu0 %v1439
      %v1441 = vpop.xlane.xlu0 %1440
      %v1442 = vsel %vm1303, %v1397, 0.0
      %1443 = vadd.xlane.f32.xlu0 %v1442
      %v1444 = vpop.xlane.xlu0 %1443
      %v1445 = vsel %vm1303, %v1399, 0.0
      %1446 = vadd.xlane.f32.xlu0 %v1445
      %v1447 = vpop.xlane.xlu0 %1446
      %v1448 = vlog2.pop %v1402
      %v1449 = vmul.f32 %v1448, 0.6931472
      %v1450 = vlog2.pop %v1405
      %v1451 = vmul.f32 %v1450, 0.6931472
      %v1452 = vlog2.pop %v1408
      %v1453 = vmul.f32 %v1452, 0.6931472
      %v1454 = vlog2.pop %v1411
      %v1455 = vmul.f32 %v1454, 0.6931472
      %v1456 = vlog2.pop %v1414
      %v1457 = vmul.f32 %v1456, 0.6931472
      %v1458 = vlog2.pop %v1417
      %v1459 = vmul.f32 %v1458, 0.6931472
      %v1460 = vlog2.pop %v1420
      %v1461 = vmul.f32 %v1460, 0.6931472
      %v1462 = vlog2.pop %v1423
      %v1463 = vmul.f32 %v1462, 0.6931472
      %v1464 = vlog2.pop %v1426
      %v1465 = vmul.f32 %v1464, 0.6931472
      %v1466 = vlog2.pop %v1429
      %v1467 = vmul.f32 %v1466, 0.6931472
      %v1468 = vlog2.pop %v1432
      %v1469 = vmul.f32 %v1468, 0.6931472
      %v1470 = vlog2.pop %v1435
      %v1471 = vmul.f32 %v1470, 0.6931472
      %v1472 = vlog2.pop %v1438
      %v1473 = vmul.f32 %v1472, 0.6931472
      %v1474 = vlog2.pop %v1441
      %v1475 = vmul.f32 %v1474, 0.6931472
      %v1476 = vlog2.pop %v1444
      %v1477 = vmul.f32 %v1476, 0.6931472
      %v1478 = vlog2.pop %v1447
      %v1479 = vmul.f32 %v1478, 0.6931472
      %v1480 = vadd.f32 %v1306, %v1449
      %v1481 = vadd.f32 %v1309, %v1451
      %v1482 = vadd.f32 %v1312, %v1453
      %v1483 = vadd.f32 %v1315, %v1455
      %v1484 = vadd.f32 %v1318, %v1457
      %v1485 = vadd.f32 %v1321, %v1459
      %v1486 = vadd.f32 %v1324, %v1461
      %v1487 = vadd.f32 %v1327, %v1463
      %v1488 = vadd.f32 %v1330, %v1465
      %v1489 = vadd.f32 %v1333, %v1467
      %v1490 = vadd.f32 %v1336, %v1469
      %v1491 = vadd.f32 %v1339, %v1471
      %v1492 = vadd.f32 %v1342, %v1473
      %v1493 = vadd.f32 %v1345, %v1475
      %v1494 = vadd.f32 %v1348, %v1477
      %v1495 = vadd.f32 %v1351, %v1479
      %v1496 = vlaneseq
      %v1497 = vand.u32 %v1496, 127
      %1498 = vset.pattern.permute.xlu0 0
      %1499 = vperm.xlu0 %1498, %v212
      %v1500 = vpop.permute.xlu0 %1499
      %1501 = vset.pattern.permute.xlu0 0
      %1502 = vperm.xlu0 %1501, %v213
      %v1503 = vpop.permute.xlu0 %1502
      %1504 = vset.pattern.permute.xlu0 0
      %1505 = vperm.xlu0 %1504, %v214
      %v1506 = vpop.permute.xlu0 %1505
      %1507 = vset.pattern.permute.xlu0 0
      %1508 = vperm.xlu0 %1507, %v215
      %v1509 = vpop.permute.xlu0 %1508
      %1510 = vset.pattern.permute.xlu0 0
      %1511 = vperm.xlu0 %1510, %v216
      %v1512 = vpop.permute.xlu0 %1511
      %1513 = vset.pattern.permute.xlu0 0
      %1514 = vperm.xlu0 %1513, %v217
      %v1515 = vpop.permute.xlu0 %1514
      %1516 = vset.pattern.permute.xlu0 0
      %1517 = vperm.xlu0 %1516, %v218
      %v1518 = vpop.permute.xlu0 %1517
      %1519 = vset.pattern.permute.xlu0 0
      %1520 = vperm.xlu0 %1519, %v219
      %v1521 = vpop.permute.xlu0 %1520
      %1522 = vset.pattern.permute.xlu0 0
      %1523 = vperm.xlu0 %1522, %v220
      %v1524 = vpop.permute.xlu0 %1523
      %1525 = vset.pattern.permute.xlu0 0
      %1526 = vperm.xlu0 %1525, %v221
      %v1527 = vpop.permute.xlu0 %1526
      %1528 = vset.pattern.permute.xlu0 0
      %1529 = vperm.xlu0 %1528, %v222
      %v1530 = vpop.permute.xlu0 %1529
      %1531 = vset.pattern.permute.xlu0 0
      %1532 = vperm.xlu0 %1531, %v223
      %v1533 = vpop.permute.xlu0 %1532
      %1534 = vset.pattern.permute.xlu0 0
      %1535 = vperm.xlu0 %1534, %v224
      %v1536 = vpop.permute.xlu0 %1535
      %1537 = vset.pattern.permute.xlu0 0
      %1538 = vperm.xlu0 %1537, %v225
      %v1539 = vpop.permute.xlu0 %1538
      %1540 = vset.pattern.permute.xlu0 0
      %1541 = vperm.xlu0 %1540, %v226
      %v1542 = vpop.permute.xlu0 %1541
      %1543 = vset.pattern.permute.xlu0 0
      %1544 = vperm.xlu0 %1543, %v227
      %v1545 = vpop.permute.xlu0 %1544
      %vm1546 = vcmp.eq.s32.totalorder %v1497, %v1500
      %vm1547 = vcmp.eq.s32.totalorder %v1497, %v1503
      %vm1548 = vcmp.eq.s32.totalorder %v1497, %v1506
      %vm1549 = vcmp.eq.s32.totalorder %v1497, %v1509
      %vm1550 = vcmp.eq.s32.totalorder %v1497, %v1512
      %vm1551 = vcmp.eq.s32.totalorder %v1497, %v1515
      %vm1552 = vcmp.eq.s32.totalorder %v1497, %v1518
      %vm1553 = vcmp.eq.s32.totalorder %v1497, %v1521
      %vm1554 = vcmp.eq.s32.totalorder %v1497, %v1524
      %vm1555 = vcmp.eq.s32.totalorder %v1497, %v1527
      %vm1556 = vcmp.eq.s32.totalorder %v1497, %v1530
      %vm1557 = vcmp.eq.s32.totalorder %v1497, %v1533
      %vm1558 = vcmp.eq.s32.totalorder %v1497, %v1536
      %vm1559 = vcmp.eq.s32.totalorder %v1497, %v1539
      %vm1560 = vcmp.eq.s32.totalorder %v1497, %v1542
      %vm1561 = vcmp.eq.s32.totalorder %v1497, %v1545
      %v1562 = vsel %vm1546, %v1225, 0.0
      %v1563 = vsel %vm1547, %v1230, 0.0
      %v1564 = vsel %vm1548, %v1235, 0.0
      %v1565 = vsel %vm1549, %v1240, 0.0
      %v1566 = vsel %vm1550, %v1245, 0.0
      %v1567 = vsel %vm1551, %v1250, 0.0
      %v1568 = vsel %vm1552, %v1255, 0.0
      %v1569 = vsel %vm1553, %v1260, 0.0
      %v1570 = vsel %vm1554, %v1265, 0.0
      %v1571 = vsel %vm1555, %v1270, 0.0
      %v1572 = vsel %vm1556, %v1275, 0.0
      %v1573 = vsel %vm1557, %v1280, 0.0
      %v1574 = vsel %vm1558, %v1285, 0.0
      %v1575 = vsel %vm1559, %v1290, 0.0
      %v1576 = vsel %vm1560, %v1295, 0.0
      %v1577 = vsel %vm1561, %v1300, 0.0
      %v1578 = vsel %vm1303, %v1562, 0.0
      %1579 = vadd.xlane.f32.xlu0 %v1578
      %v1580 = vpop.xlane.xlu0 %1579
      %v1581 = vsel %vm1303, %v1563, 0.0
      %1582 = vadd.xlane.f32.xlu0 %v1581
      %v1583 = vpop.xlane.xlu0 %1582
      %v1584 = vsel %vm1303, %v1564, 0.0
      %1585 = vadd.xlane.f32.xlu0 %v1584
      %v1586 = vpop.xlane.xlu0 %1585
      %v1587 = vsel %vm1303, %v1565, 0.0
      %1588 = vadd.xlane.f32.xlu0 %v1587
      %v1589 = vpop.xlane.xlu0 %1588
      %v1590 = vsel %vm1303, %v1566, 0.0
      %1591 = vadd.xlane.f32.xlu0 %v1590
      %v1592 = vpop.xlane.xlu0 %1591
      %v1593 = vsel %vm1303, %v1567, 0.0
      %1594 = vadd.xlane.f32.xlu0 %v1593
      %v1595 = vpop.xlane.xlu0 %1594
      %v1596 = vsel %vm1303, %v1568, 0.0
      %1597 = vadd.xlane.f32.xlu0 %v1596
      %v1598 = vpop.xlane.xlu0 %1597
      %v1599 = vsel %vm1303, %v1569, 0.0
      %1600 = vadd.xlane.f32.xlu0 %v1599
      %v1601 = vpop.xlane.xlu0 %1600
      %v1602 = vsel %vm1303, %v1570, 0.0
      %1603 = vadd.xlane.f32.xlu0 %v1602
      %v1604 = vpop.xlane.xlu0 %1603
      %v1605 = vsel %vm1303, %v1571, 0.0
      %1606 = vadd.xlane.f32.xlu0 %v1605
      %v1607 = vpop.xlane.xlu0 %1606
      %v1608 = vsel %vm1303, %v1572, 0.0
      %1609 = vadd.xlane.f32.xlu0 %v1608
      %v1610 = vpop.xlane.xlu0 %1609
      %v1611 = vsel %vm1303, %v1573, 0.0
      %1612 = vadd.xlane.f32.xlu0 %v1611
      %v1613 = vpop.xlane.xlu0 %1612
      %v1614 = vsel %vm1303, %v1574, 0.0
      %1615 = vadd.xlane.f32.xlu0 %v1614
      %v1616 = vpop.xlane.xlu0 %1615
      %v1617 = vsel %vm1303, %v1575, 0.0
      %1618 = vadd.xlane.f32.xlu0 %v1617
      %v1619 = vpop.xlane.xlu0 %1618
      %v1620 = vsel %vm1303, %v1576, 0.0
      %1621 = vadd.xlane.f32.xlu0 %v1620
      %v1622 = vpop.xlane.xlu0 %1621
      %v1623 = vsel %vm1303, %v1577, 0.0
      %1624 = vadd.xlane.f32.xlu0 %v1623
      %v1625 = vpop.xlane.xlu0 %1624
      %v1626 = vsub.f32 %v1480, %v1580
      %v1627 = vsub.f32 %v1481, %v1583
      %v1628 = vsub.f32 %v1482, %v1586
      %v1629 = vsub.f32 %v1483, %v1589
      %v1630 = vsub.f32 %v1484, %v1592
      %v1631 = vsub.f32 %v1485, %v1595
      %v1632 = vsub.f32 %v1486, %v1598
      %v1633 = vsub.f32 %v1487, %v1601
      %v1634 = vsub.f32 %v1488, %v1604
      %v1635 = vsub.f32 %v1489, %v1607
      %v1636 = vsub.f32 %v1490, %v1610
      %v1637 = vsub.f32 %v1491, %v1613
      %v1638 = vsub.f32 %v1492, %v1616
      %v1639 = vsub.f32 %v1493, %v1619
      %v1640 = vsub.f32 %v1494, %v1622
      %v1641 = vsub.f32 %v1495, %v1625
      %v1642 = vsub.f32 0.0, %v1007
      %v1643 = vsub.f32 0.0, %v1012
      %v1644 = vsub.f32 0.0, %v1017
      %v1645 = vsub.f32 0.0, %v1022
      %v1646 = vsub.f32 0.0, %v1027
      %v1647 = vsub.f32 0.0, %v1032
      %v1648 = vsub.f32 0.0, %v1037
      %v1649 = vsub.f32 0.0, %v1042
      %v1650 = vsub.f32 0.0, %v1047
      %v1651 = vsub.f32 0.0, %v1052
      %v1652 = vsub.f32 0.0, %v1057
      %v1653 = vsub.f32 0.0, %v1062
      %v1654 = vsub.f32 0.0, %v1067
      %v1655 = vsub.f32 0.0, %v1072
      %v1656 = vsub.f32 0.0, %v1077
      %v1657 = vsub.f32 0.0, %v1082
      %v1658 = vmax.f32 %v1642, 0.0
      %v1659 = vmax.f32 %v1643, 0.0
      %v1660 = vmax.f32 %v1644, 0.0
      %v1661 = vmax.f32 %v1645, 0.0
      %v1662 = vmax.f32 %v1646, 0.0
      %v1663 = vmax.f32 %v1647, 0.0
      %v1664 = vmax.f32 %v1648, 0.0
      %v1665 = vmax.f32 %v1649, 0.0
      %v1666 = vmax.f32 %v1650, 0.0
      %v1667 = vmax.f32 %v1651, 0.0
      %v1668 = vmax.f32 %v1652, 0.0
      %v1669 = vmax.f32 %v1653, 0.0
      %v1670 = vmax.f32 %v1654, 0.0
      %v1671 = vmax.f32 %v1655, 0.0
      %v1672 = vmax.f32 %v1656, 0.0
      %v1673 = vmax.f32 %v1657, 0.0
      %v1674 = vand.u32 2147483647, %v1007
      %v1675 = vand.u32 2147483647, %v1012
      %v1676 = vand.u32 2147483647, %v1017
      %v1677 = vand.u32 2147483647, %v1022
      %v1678 = vand.u32 2147483647, %v1027
      %v1679 = vand.u32 2147483647, %v1032
      %v1680 = vand.u32 2147483647, %v1037
      %v1681 = vand.u32 2147483647, %v1042
      %v1682 = vand.u32 2147483647, %v1047
      %v1683 = vand.u32 2147483647, %v1052
      %v1684 = vand.u32 2147483647, %v1057
      %v1685 = vand.u32 2147483647, %v1062
      %v1686 = vand.u32 2147483647, %v1067
      %v1687 = vand.u32 2147483647, %v1072
      %v1688 = vand.u32 2147483647, %v1077
      %v1689 = vand.u32 2147483647, %v1082
      %v1690 = vsub.f32 0.0, %v1674
      %v1691 = vsub.f32 0.0, %v1675
      %v1692 = vsub.f32 0.0, %v1676
      %v1693 = vsub.f32 0.0, %v1677
      %v1694 = vsub.f32 0.0, %v1678
      %v1695 = vsub.f32 0.0, %v1679
      %v1696 = vsub.f32 0.0, %v1680
      %v1697 = vsub.f32 0.0, %v1681
      %v1698 = vsub.f32 0.0, %v1682
      %v1699 = vsub.f32 0.0, %v1683
      %v1700 = vsub.f32 0.0, %v1684
      %v1701 = vsub.f32 0.0, %v1685
      %v1702 = vsub.f32 0.0, %v1686
      %v1703 = vsub.f32 0.0, %v1687
      %v1704 = vsub.f32 0.0, %v1688
      %v1705 = vsub.f32 0.0, %v1689
      %v1706 = vmul.f32 %v1690, 1.442695
      %v1707 = vpow.pop %v1706
      %v1708 = vmul.f32 %v1691, 1.442695
      %v1709 = vpow.pop %v1708
      %v1710 = vmul.f32 %v1692, 1.442695
      %v1711 = vpow.pop %v1710
      %v1712 = vmul.f32 %v1693, 1.442695
      %v1713 = vpow.pop %v1712
      %v1714 = vmul.f32 %v1694, 1.442695
      %v1715 = vpow.pop %v1714
      %v1716 = vmul.f32 %v1695, 1.442695
      %v1717 = vpow.pop %v1716
      %v1718 = vmul.f32 %v1696, 1.442695
      %v1719 = vpow.pop %v1718
      %v1720 = vmul.f32 %v1697, 1.442695
      %v1721 = vpow.pop %v1720
      %v1722 = vmul.f32 %v1698, 1.442695
      %v1723 = vpow.pop %v1722
      %v1724 = vmul.f32 %v1699, 1.442695
      %v1725 = vpow.pop %v1724
      %v1726 = vmul.f32 %v1700, 1.442695
      %v1727 = vpow.pop %v1726
      %v1728 = vmul.f32 %v1701, 1.442695
      %v1729 = vpow.pop %v1728
      %v1730 = vmul.f32 %v1702, 1.442695
      %v1731 = vpow.pop %v1730
      %v1732 = vmul.f32 %v1703, 1.442695
      %v1733 = vpow.pop %v1732
      %v1734 = vmul.f32 %v1704, 1.442695
      %v1735 = vpow.pop %v1734
      %v1736 = vmul.f32 %v1705, 1.442695
      %v1737 = vpow.pop %v1736
      %v1738 = vadd.f32 %v1707, 1.0
      %v1739 = vadd.f32 %v1709, 1.0
      %v1740 = vadd.f32 %v1711, 1.0
      %v1741 = vadd.f32 %v1713, 1.0
      %v1742 = vadd.f32 %v1715, 1.0
      %v1743 = vadd.f32 %v1717, 1.0
      %v1744 = vadd.f32 %v1719, 1.0
      %v1745 = vadd.f32 %v1721, 1.0
      %v1746 = vadd.f32 %v1723, 1.0
      %v1747 = vadd.f32 %v1725, 1.0
      %v1748 = vadd.f32 %v1727, 1.0
      %v1749 = vadd.f32 %v1729, 1.0
      %v1750 = vadd.f32 %v1731, 1.0
      %v1751 = vadd.f32 %v1733, 1.0
      %v1752 = vadd.f32 %v1735, 1.0
      %v1753 = vadd.f32 %v1737, 1.0
      %v1754 = vlog2.pop %v1738
      %v1755 = vmul.f32 %v1754, 0.6931472
      %v1756 = vlog2.pop %v1739
      %v1757 = vmul.f32 %v1756, 0.6931472
      %v1758 = vlog2.pop %v1740
      %v1759 = vmul.f32 %v1758, 0.6931472
      %v1760 = vlog2.pop %v1741
      %v1761 = vmul.f32 %v1760, 0.6931472
      %v1762 = vlog2.pop %v1742
      %v1763 = vmul.f32 %v1762, 0.6931472
      %v1764 = vlog2.pop %v1743
      %v1765 = vmul.f32 %v1764, 0.6931472
      %v1766 = vlog2.pop %v1744
      %v1767 = vmul.f32 %v1766, 0.6931472
      %v1768 = vlog2.pop %v1745
      %v1769 = vmul.f32 %v1768, 0.6931472
      %v1770 = vlog2.pop %v1746
      %v1771 = vmul.f32 %v1770, 0.6931472
      %v1772 = vlog2.pop %v1747
      %v1773 = vmul.f32 %v1772, 0.6931472
      %v1774 = vlog2.pop %v1748
      %v1775 = vmul.f32 %v1774, 0.6931472
      %v1776 = vlog2.pop %v1749
      %v1777 = vmul.f32 %v1776, 0.6931472
      %v1778 = vlog2.pop %v1750
      %v1779 = vmul.f32 %v1778, 0.6931472
      %v1780 = vlog2.pop %v1751
      %v1781 = vmul.f32 %v1780, 0.6931472
      %v1782 = vlog2.pop %v1752
      %v1783 = vmul.f32 %v1782, 0.6931472
      %v1784 = vlog2.pop %v1753
      %v1785 = vmul.f32 %v1784, 0.6931472
      %v1786 = vadd.f32 %v1658, %v1755
      %v1787 = vadd.f32 %v1659, %v1757
      %v1788 = vadd.f32 %v1660, %v1759
      %v1789 = vadd.f32 %v1661, %v1761
      %v1790 = vadd.f32 %v1662, %v1763
      %v1791 = vadd.f32 %v1663, %v1765
      %v1792 = vadd.f32 %v1664, %v1767
      %v1793 = vadd.f32 %v1665, %v1769
      %v1794 = vadd.f32 %v1666, %v1771
      %v1795 = vadd.f32 %v1667, %v1773
      %v1796 = vadd.f32 %v1668, %v1775
      %v1797 = vadd.f32 %v1669, %v1777
      %v1798 = vadd.f32 %v1670, %v1779
      %v1799 = vadd.f32 %v1671, %v1781
      %v1800 = vadd.f32 %v1672, %v1783
      %v1801 = vadd.f32 %v1673, %v1785
      %1818 = vrot.lane.b32.xlu0 %v1786, 96
      %v1819 = vpop.permute.xlu0 %1818
      %1820 = vrot.lane.b32.xlu0 %v1787, 96
      %v1821 = vpop.permute.xlu0 %1820
      %1822 = vrot.lane.b32.xlu0 %v1788, 96
      %v1823 = vpop.permute.xlu0 %1822
      %1824 = vrot.lane.b32.xlu0 %v1789, 96
      %v1825 = vpop.permute.xlu0 %1824
      %1826 = vrot.lane.b32.xlu0 %v1790, 96
      %v1827 = vpop.permute.xlu0 %1826
      %1828 = vrot.lane.b32.xlu0 %v1791, 96
      %v1829 = vpop.permute.xlu0 %1828
      %1830 = vrot.lane.b32.xlu0 %v1792, 96
      %v1831 = vpop.permute.xlu0 %1830
      %1832 = vrot.lane.b32.xlu0 %v1793, 96
      %v1833 = vpop.permute.xlu0 %1832
      %1834 = vrot.lane.b32.xlu0 %v1794, 96
      %v1835 = vpop.permute.xlu0 %1834
      %1836 = vrot.lane.b32.xlu0 %v1795, 96
      %v1837 = vpop.permute.xlu0 %1836
      %1838 = vrot.lane.b32.xlu0 %v1796, 96
      %v1839 = vpop.permute.xlu0 %1838
      %1840 = vrot.lane.b32.xlu0 %v1797, 96
      %v1841 = vpop.permute.xlu0 %1840
      %1842 = vrot.lane.b32.xlu0 %v1798, 96
      %v1843 = vpop.permute.xlu0 %1842
      %1844 = vrot.lane.b32.xlu0 %v1799, 96
      %v1845 = vpop.permute.xlu0 %1844
      %1846 = vrot.lane.b32.xlu0 %v1800, 96
      %v1847 = vpop.permute.xlu0 %1846
      %1848 = vrot.lane.b32.xlu0 %v1801, 96
      %v1849 = vpop.permute.xlu0 %1848
      %vm1866 = vcmask 7168
      %v1867 = vsel %vm1866, %v1819, 0.0
      %v1868 = vsel %vm1866, %v1821, 0.0
      %v1869 = vadd.f32 %v1867, %v1868
      %v1870 = vsel %vm1866, %v1823, 0.0
      %v1871 = vadd.f32 %v1869, %v1870
      %v1872 = vsel %vm1866, %v1825, 0.0
      %v1873 = vadd.f32 %v1871, %v1872
      %v1874 = vsel %vm1866, %v1827, 0.0
      %v1875 = vadd.f32 %v1873, %v1874
      %v1876 = vsel %vm1866, %v1829, 0.0
      %v1877 = vadd.f32 %v1875, %v1876
      %v1878 = vsel %vm1866, %v1831, 0.0
      %v1879 = vadd.f32 %v1877, %v1878
      %v1880 = vsel %vm1866, %v1833, 0.0
      %v1881 = vadd.f32 %v1879, %v1880
      %v1882 = vsel %vm1866, %v1835, 0.0
      %v1883 = vadd.f32 %v1881, %v1882
      %v1884 = vsel %vm1866, %v1837, 0.0
      %v1885 = vadd.f32 %v1883, %v1884
      %v1886 = vsel %vm1866, %v1839, 0.0
      %v1887 = vadd.f32 %v1885, %v1886
      %v1888 = vsel %vm1866, %v1841, 0.0
      %v1889 = vadd.f32 %v1887, %v1888
      %v1890 = vsel %vm1866, %v1843, 0.0
      %v1891 = vadd.f32 %v1889, %v1890
      %v1892 = vsel %vm1866, %v1845, 0.0
      %v1893 = vadd.f32 %v1891, %v1892
      %v1894 = vsel %vm1866, %v1847, 0.0
      %v1895 = vadd.f32 %v1893, %v1894
      %v1896 = vsel %vm1866, %v1849, 0.0
      %v1897 = vadd.f32 %v1895, %v1896
      %1898 = vadd.xlane.f32.xlu0 %v1897
      %v1899 = vpop.xlane.xlu0 %1898
      %v1900 = vrot.slane %v1899, 4
      %v1901 = vadd.f32 %v1899, %v1900
      %v1902 = vrot.slane %v1901, 2
      %v1903 = vadd.f32 %v1901, %v1902
      %v1904 = vrot.slane %v1903, 1
      %v1905 = vadd.f32 %v1903, %v1904
      %s1906 = vtos %v1905
      %v1907 = vrcp.pop 128.0
      %s1908 = vtos %v1907
      %s1909 = smul.f32 %s1906, %s1908
      %v1910 = vmul.f32 %v1626, 0.5
      %v1911 = vmul.f32 %v1627, 0.5
      %v1912 = vmul.f32 %v1628, 0.5
      %v1913 = vmul.f32 %v1629, 0.5
      %v1914 = vmul.f32 %v1630, 0.5
      %v1915 = vmul.f32 %v1631, 0.5
      %v1916 = vmul.f32 %v1632, 0.5
      %v1917 = vmul.f32 %v1633, 0.5
      %v1918 = vmul.f32 %v1634, 0.5
      %v1919 = vmul.f32 %v1635, 0.5
      %v1920 = vmul.f32 %v1636, 0.5
      %v1921 = vmul.f32 %v1637, 0.5
      %v1922 = vmul.f32 %v1638, 0.5
      %v1923 = vmul.f32 %v1639, 0.5
      %v1924 = vmul.f32 %v1640, 0.5
      %v1925 = vmul.f32 %v1641, 0.5
      %v1926 = vstv %s1909
      %v1927 = vadd.f32 %v1910, %v1926
      %v1928 = vadd.f32 %v1911, %v1926
      %v1929 = vadd.f32 %v1912, %v1926
      %v1930 = vadd.f32 %v1913, %v1926
      %v1931 = vadd.f32 %v1914, %v1926
      %v1932 = vadd.f32 %v1915, %v1926
      %v1933 = vadd.f32 %v1916, %v1926
      %v1934 = vadd.f32 %v1917, %v1926
      %v1935 = vadd.f32 %v1918, %v1926
      %v1936 = vadd.f32 %v1919, %v1926
      %v1937 = vadd.f32 %v1920, %v1926
      %v1938 = vadd.f32 %v1921, %v1926
      %v1939 = vadd.f32 %v1922, %v1926
      %v1940 = vadd.f32 %v1923, %v1926
      %v1941 = vadd.f32 %v1924, %v1926
      %v1942 = vadd.f32 %v1925, %v1926
      %v1943 = vsel %vm669, %v646, %v1626
      %v1944 = vsel %vm669, %v647, %v1627
      %v1945 = vsel %vm669, %v648, %v1628
      %v1946 = vsel %vm669, %v649, %v1629
      %v1947 = vsel %vm669, %v650, %v1630
      %v1948 = vsel %vm669, %v651, %v1631
      %v1949 = vsel %vm669, %v652, %v1632
      %v1950 = vsel %vm669, %v653, %v1633
      %v1951 = vsel %vm669, %v654, %v1634
      %v1952 = vsel %vm669, %v655, %v1635
      %v1953 = vsel %vm669, %v656, %v1636
      %v1954 = vsel %vm669, %v657, %v1637
      %v1955 = vsel %vm669, %v658, %v1638
      %v1956 = vsel %vm669, %v659, %v1639
      %v1957 = vsel %vm669, %v660, %v1640
      %v1958 = vsel %vm669, %v661, %v1641
      %vm1959 = vcmask 138240
      %v1960 = vsel %vm1959, %v1943, %v1927
      %v1961 = vsel %vm1959, %v1944, %v1928
      %v1962 = vsel %vm1959, %v1945, %v1929
      %v1963 = vsel %vm1959, %v1946, %v1930
      %v1964 = vsel %vm1959, %v1947, %v1931
      %v1965 = vsel %vm1959, %v1948, %v1932
      %v1966 = vsel %vm1959, %v1949, %v1933
      %v1967 = vsel %vm1959, %v1950, %v1934
      %v1968 = vsel %vm1959, %v1951, %v1935
      %v1969 = vsel %vm1959, %v1952, %v1936
      %v1970 = vsel %vm1959, %v1953, %v1937
      %v1971 = vsel %vm1959, %v1954, %v1938
      %v1972 = vsel %vm1959, %v1955, %v1939
      %v1973 = vsel %vm1959, %v1956, %v1940
      %v1974 = vsel %vm1959, %v1957, %v1941
      %v1975 = vsel %vm1959, %v1958, %v1942
      %vm1976 = vcmask 146432
      %v1977 = vsel %vm1976, %v1960, 0.0
      %v1978 = vsel %vm1976, %v1961, 0.0
      %v1979 = vsel %vm1976, %v1962, 0.0
      %v1980 = vsel %vm1976, %v1963, 0.0
      %v1981 = vsel %vm1976, %v1964, 0.0
      %v1982 = vsel %vm1976, %v1965, 0.0
      %v1983 = vsel %vm1976, %v1966, 0.0
      %v1984 = vsel %vm1976, %v1967, 0.0
      %v1985 = vsel %vm1976, %v1968, 0.0
      %v1986 = vsel %vm1976, %v1969, 0.0
      %v1987 = vsel %vm1976, %v1970, 0.0
      %v1988 = vsel %vm1976, %v1971, 0.0
      %v1989 = vsel %vm1976, %v1972, 0.0
      %v1990 = vsel %vm1976, %v1973, 0.0
      %v1991 = vsel %vm1976, %v1974, 0.0
      %v1992 = vsel %vm1976, %v1975, 0.0
      %1993 = vst [vmem:[%s194] sm:$0xff] %v1977
      %1994 = vst [vmem:[%s194 + $0x8] sm:$0xff] %v1978
      %1995 = vst [vmem:[%s194 + $0x10] sm:$0xff] %v1979
      %1996 = vst [vmem:[%s194 + $0x18] sm:$0xff] %v1980
      %1997 = vst [vmem:[%s194 + $0x20] sm:$0xff] %v1981
      %1998 = vst [vmem:[%s194 + $0x28] sm:$0xff] %v1982
      %1999 = vst [vmem:[%s194 + $0x30] sm:$0xff] %v1983
      %2000 = vst [vmem:[%s194 + $0x38] sm:$0xff] %v1984
      %2001 = vst [vmem:[%s194 + $0x40] sm:$0xff] %v1985
      %2002 = vst [vmem:[%s194 + $0x48] sm:$0xff] %v1986
      %2003 = vst [vmem:[%s194 + $0x50] sm:$0xff] %v1987
      %2004 = vst [vmem:[%s194 + $0x58] sm:$0xff] %v1988
      %2005 = vst [vmem:[%s194 + $0x60] sm:$0xff] %v1989
      %2006 = vst [vmem:[%s194 + $0x68] sm:$0xff] %v1990
      %2007 = vst [vmem:[%s194 + $0x70] sm:$0xff] %v1991
      %2008 = vst [vmem:[%s194 + $0x78] sm:$0xff] %v1992
      %s2009 = smul.u32 16, %s14
      %p2010 = scmp.lt.s32.totalorder %s2009, 63
      %s2011 = scalar_select %p2010, %s2009, 63
      %s2012 = smul.addr %s2011, 8
      %s2013 = scalar_lea.vmem %s3, %s2012
      // Predicated region
      $region33: #{env_rollout.1} parent=31 // pred_check
        %p2014 = pneg %p105
      $region34: #{env_rollout.1} parent=31 // pred_check_branch
        %2016 = sbr.rel (%p2014) target = $region36
      $region35: #{env_rollout.1} parent=31 // pred_region
        %s2017 = smul.u32 16, %s14
      $region36: #{env_rollout.1} parent=31 // pred_fallthru
        _
    $region32: #{env_rollout.1} parent=5 // pred_fallthru
      _
    %p2018 = scmp.le.s32.totalorder 2, %s9
    // Predicated region
    $region37: #{env_rollout.1} parent=5 // pred_check
      %p2019 = pneg %p2018
    $region38: #{env_rollout.1} parent=5 // pred_check_branch
      %2021 = sbr.rel (%p2019) target = $region40
    $region39: #{env_rollout.1} parent=5 // pred_region
      %s2022 = ssub.s32 %s9, 2
      // Predicated region
      $region41: #{env_rollout.1} parent=39 // pred_check
        %p2023 = pneg %p111
      $region42: #{env_rollout.1} parent=39 // pred_check_branch
        %2025 = sbr.rel (%p2023) target = $region44
      $region43: #{env_rollout.1} parent=39 // pred_region
        %s2026 = smul.u32 16, %s15
        %p2027 = scmp.lt.s32.totalorder %s2026, 63
        %s2028 = scalar_select %p2027, %s2026, 63
        %s2029 = smul.addr %s2028, 8
        %s2030 = scalar_lea.vmem %s3, %s2029
      $region44: #{env_rollout.1} parent=39 // pred_fallthru
        _
    $region40: #{env_rollout.1} parent=5 // pred_fallthru
      _
  $region6: #{env_rollout.1} parent=0 // loop_footer
    %s13 = sadd.s32 1, %s9
  $region7: #{env_rollout.1} parent=0 // loop_footer_branch
    %8 = sbr.rel target = $region3
  $region8: #{env_rollout.1} parent=0 // loop_exit
    _

</llo_original>
